<compile_context>
chip_gen: v7x
topology: tpu7x:2x2x1
jax: 0.10.0
libtpu: 0.0.40
codegen_flags: <defaults>
</compile_context>

<pallas_src>
import functools

import jax
import jax.numpy as jnp
from jax.experimental import pallas as pl
from jax.experimental.pallas import tpu as pltpu


def _lstm_fused_kernel(*refs, seq_len, batch, hid_dim, apply_dropout):
    if apply_dropout:
        (x2d_ref, wih_ref, whh_ref, b_ref, h0_ref, c0_ref, mask_ref,
         out_ref, hfin_ref, cfin_ref,
         xproj_scr, h_scr, c_scr) = refs
    else:
        (x2d_ref, wih_ref, whh_ref, b_ref, h0_ref, c0_ref,
         out_ref, hfin_ref, cfin_ref,
         xproj_scr, h_scr, c_scr) = refs
        mask_ref = None

    T, B, H = seq_len, batch, hid_dim

    # ---- hoisted input projection: one big MXU matmul for every timestep ----
    #   (T*B, D) bf16 @ (D, 4H) bf16 -> (T*B, 4H) f32, + bias
    xp = jnp.dot(x2d_ref[...], wih_ref[...],
                 preferred_element_type=jnp.float32) + b_ref[...]
    xproj_scr[...] = xp

    # ---- recurrence (the only serialized part) ----
    h_scr[...] = h0_ref[...]
    c_scr[...] = c0_ref[...]

    # Lane mask selecting the g-gate block so the sigmoid/tanh pass stays
    # lane-dense on the full (B, 4H) tile (no 32-lane-wide transcendentals).
    lane = jax.lax.broadcasted_iota(jnp.int32, (B, 4 * H), 1)
    g_block = (lane >= 2 * H) & (lane < 3 * H)

    def step(t, carry):
        h = h_scr[...]
        c = c_scr[...]

        xp_t = xproj_scr[pl.ds(pl.multiple_of(t * B, B), B), :]          # (B, 4H)
        gates = xp_t + jnp.dot(h.astype(whh_ref.dtype), whh_ref[...],
                               preferred_element_type=jnp.float32)       # (B, 4H)

        act = jnp.where(g_block, jnp.tanh(gates), jax.nn.sigmoid(gates))
        i_g = act[:, 0 * H:1 * H]
        f_g = act[:, 1 * H:2 * H]
        g_g = act[:, 2 * H:3 * H]
        o_g = act[:, 3 * H:4 * H]

        c_new = f_g * c + i_g * g_g
        h_new = o_g * jnp.tanh(c_new)
        c_scr[...] = c_new
        h_scr[...] = h_new

        out_t = h_new
        if apply_dropout:
            out_t = out_t * mask_ref[t]
        out_ref[t] = out_t.astype(out_ref.dtype)
        return carry

    jax.lax.fori_loop(0, T, step, 0, unroll=True)

    # final hidden state written exactly once
    hfin_ref[...] = h_scr[...].astype(hfin_ref.dtype)
    cfin_ref[...] = c_scr[...].astype(cfin_ref.dtype)


def prepare_params(w_ih, w_hh, b_ih, b_hh, *, matmul_dtype=jnp.bfloat16):
    """One-time parameter prep (hoisted off the per-call path).

    PyTorch layout in: w_ih (4H, D), w_hh (4H, H), b_* (4H,).
    Returns (W_ih^T (D,4H), W_hh^T (H,4H), bias (1,4H)) with bf16 matmul operands.
    """
    wih_t = jnp.transpose(jnp.asarray(w_ih)).astype(matmul_dtype)
    whh_t = jnp.transpose(jnp.asarray(w_hh)).astype(matmul_dtype)
    bias = (jnp.asarray(b_ih) + jnp.asarray(b_hh)).astype(jnp.float32).reshape(1, -1)
    return wih_t, whh_t, bias


def basic_unit_forward(x, params, *, hidden_state=None, droprate=0.0,
                       training=False, dropout_rng=None):
    """x: (T, B, D). Returns (out (T, B, H), (h (1, B, H), c (1, B, H)))."""
    wih_t, whh_t, bias = params
    T, B, D = x.shape
    H = whh_t.shape[0]

    if hidden_state is None:           # module starts with hidden_state = None -> zeros
        h0 = jnp.zeros((B, H), jnp.float32)
        c0 = jnp.zeros((B, H), jnp.float32)
    else:
        h0, c0 = hidden_state
        h0 = jnp.asarray(h0).reshape(B, H).astype(jnp.float32)
        c0 = jnp.asarray(c0).reshape(B, H).astype(jnp.float32)

    apply_dropout = (float(droprate) > 0.0) and bool(training)

    x2d = x.reshape(T * B, D).astype(wih_t.dtype)       # free XLA reshape/cast
    inputs = [x2d, wih_t, whh_t, bias, h0, c0]
    in_specs = [
        pl.BlockSpec((T * B, D), lambda i: (0, 0)),
        pl.BlockSpec((D, 4 * H), lambda i: (0, 0)),
        pl.BlockSpec((H, 4 * H), lambda i: (0, 0)),
        pl.BlockSpec((1, 4 * H), lambda i: (0, 0)),
        pl.BlockSpec((B, H), lambda i: (0, 0)),
        pl.BlockSpec((B, H), lambda i: (0, 0)),
    ]

    if apply_dropout:
        # TODO(synk): in-kernel pltpu.prng_* does not lower in interpret mode, so the
        # inverted-dropout mask is generated host-side and applied inside the kernel.
        if dropout_rng is None:
            dropout_rng = jax.random.PRNGKey(0)
        keep = jax.random.bernoulli(dropout_rng, 1.0 - droprate, (T, B, H))
        mask = keep.astype(jnp.float32) * (1.0 / (1.0 - droprate))
        inputs.append(mask)
        in_specs.append(pl.BlockSpec((T, B, H), lambda i: (0, 0, 0)))

    kernel = functools.partial(_lstm_fused_kernel, seq_len=T, batch=B, hid_dim=H,
                               apply_dropout=apply_dropout)

    out, h_fin, c_fin = pl.pallas_call(
        kernel,
        out_shape=(
            jax.ShapeDtypeStruct((T, B, H), jnp.float32),
            jax.ShapeDtypeStruct((B, H), jnp.float32),
            jax.ShapeDtypeStruct((B, H), jnp.float32),
        ),
        grid_spec=pltpu.PrefetchScalarGridSpec(
            num_scalar_prefetch=0,
            grid=(1,),                                   # whole T loop fused in one invocation
            in_specs=in_specs,
            out_specs=[
                pl.BlockSpec((T, B, H), lambda i: (0, 0, 0)),
                pl.BlockSpec((B, H), lambda i: (0, 0)),
                pl.BlockSpec((B, H), lambda i: (0, 0)),
            ],
            scratch_shapes=[
                pltpu.VMEM((T * B, 4 * H), jnp.float32),  # hoisted input projection
                pltpu.VMEM((B, H), jnp.float32),          # h carry
                pltpu.VMEM((B, H), jnp.float32),          # c carry
            ],
        ),
        compiler_params=pltpu.CompilerParams(
            dimension_semantics=("arbitrary",),           # time recurrence is serial
        ),
    )(*inputs)

    return out, (h_fin[None], c_fin[None])


def _lstm_reference(x, w_ih, w_hh, b_ih, b_hh):
    """Pure-JAX f32 reference (no dropout) for correctness checking."""
    T, B, D = x.shape
    H = w_hh.shape[1]
    bias = b_ih + b_hh

    def step(carry, x_t):
        h, c = carry
        gates = x_t @ w_ih.T + h @ w_hh.T + bias
        i = jax.nn.sigmoid(gates[:, 0 * H:1 * H])
        f = jax.nn.sigmoid(gates[:, 1 * H:2 * H])
        g = jnp.tanh(gates[:, 2 * H:3 * H])
        o = jax.nn.sigmoid(gates[:, 3 * H:4 * H])
        c_new = f * c + i * g
        h_new = o * jnp.tanh(c_new)
        return (h_new, c_new), h_new

    init = (jnp.zeros((B, H), jnp.float32), jnp.zeros((B, H), jnp.float32))
    (h_fin, c_fin), out = jax.lax.scan(step, init, x)
    return out, (h_fin[None], c_fin[None])


if __name__ == "__main__":
    # BasicUnit('lstm', input_dim=32, hid_dim=32, droprate=0.5)
    T, B, D, H = 8, 8, 32, 32
    droprate = 0.5

    key = jax.random.PRNGKey(0)
    kx, k1, k2, k3, k4, kdrop = jax.random.split(key, 6)
    bound = 1.0 / float(H) ** 0.5      # PyTorch LSTM default init: U(-1/sqrt(H), 1/sqrt(H))
    w_ih = jax.random.uniform(k1, (4 * H, D), jnp.float32, -bound, bound)
    w_hh = jax.random.uniform(k2, (4 * H, H), jnp.float32, -bound, bound)
    b_ih = jax.random.uniform(k3, (4 * H,), jnp.float32, -bound, bound)
    b_hh = jax.random.uniform(k4, (4 * H,), jnp.float32, -bound, bound)
    x = jax.random.normal(kx, (T, B, D), jnp.float32)

    params = prepare_params(w_ih, w_hh, b_ih, b_hh)   # one-time prep (transpose/cast/bias)

    # eval mode (dropout identity) -> compare against pure-JAX f32 reference
    out_eval, (h_eval, c_eval) = basic_unit_forward(
        x, params, droprate=droprate, training=False)
    jax.block_until_ready(out_eval)

    ref_out, (ref_h, ref_c) = _lstm_reference(x, w_ih, w_hh, b_ih, b_hh)
    # bf16 MXU operands (f32 accumulation) -> loose-but-meaningful tolerance
    assert jnp.allclose(out_eval, ref_out, atol=5e-2, rtol=5e-2), "output mismatch"
    assert jnp.allclose(h_eval, ref_h, atol=5e-2, rtol=5e-2), "final h mismatch"
    assert jnp.allclose(c_eval, ref_c, atol=5e-2, rtol=5e-2), "final c mismatch"

    # training mode: dropout applied inside the kernel with a deterministic host-side mask
    out_train, _ = basic_unit_forward(
        x, params, droprate=droprate, training=True, dropout_rng=kdrop)
    jax.block_until_ready(out_train)

    keep = jax.random.bernoulli(kdrop, 1.0 - droprate, (T, B, H))
    mask = keep.astype(jnp.float32) / (1.0 - droprate)
    assert jnp.allclose(out_train, out_eval * mask, atol=1e-5, rtol=1e-5), "dropout mismatch"

    print("KERNEL_OK")
</pallas_src>

<mosaic_0001>
module attributes {stable_mosaic.version = 11 : i64} {
  func.func @_lstm_fused_kernel(%arg0: i32, %arg1: memref<64x32xbf16, #tpu.memory_space<vmem>>, %arg2: memref<32x128xbf16, #tpu.memory_space<vmem>>, %arg3: memref<32x128xbf16, #tpu.memory_space<vmem>>, %arg4: memref<1x128xf32, #tpu.memory_space<vmem>>, %arg5: memref<8x32xf32, #tpu.memory_space<vmem>>, %arg6: memref<8x32xf32, #tpu.memory_space<vmem>>, %arg7: memref<8x8x32xf32, #tpu.memory_space<vmem>>, %arg8: memref<8x32xf32, #tpu.memory_space<vmem>>, %arg9: memref<8x32xf32, #tpu.memory_space<vmem>>, %arg10: memref<64x128xf32, #tpu.memory_space<vmem>>, %arg11: memref<8x32xf32, #tpu.memory_space<vmem>>, %arg12: memref<8x32xf32, #tpu.memory_space<vmem>>) attributes {dimension_semantics = [#tpu.dimension_semantics<arbitrary>], iteration_bounds = array<i64: 1>, scalar_prefetch = 0 : i64, scratch_operands = 3 : i64, tpu.core_type = #tpu.core_type<tc>, window_params = [{pipeline_mode = #tpu.pipeline_mode<synchronous>, transform_indices = @transform_0, window_bounds = array<i64: 64, 32>}, {pipeline_mode = #tpu.pipeline_mode<synchronous>, transform_indices = @transform_1, window_bounds = array<i64: 32, 128>}, {pipeline_mode = #tpu.pipeline_mode<synchronous>, transform_indices = @transform_2, window_bounds = array<i64: 32, 128>}, {pipeline_mode = #tpu.pipeline_mode<synchronous>, transform_indices = @transform_3, window_bounds = array<i64: 1, 128>}, {pipeline_mode = #tpu.pipeline_mode<synchronous>, transform_indices = @transform_4, window_bounds = array<i64: 8, 32>}, {pipeline_mode = #tpu.pipeline_mode<synchronous>, transform_indices = @transform_5, window_bounds = array<i64: 8, 32>}, {pipeline_mode = #tpu.pipeline_mode<synchronous>, transform_indices = @transform_6, window_bounds = array<i64: 8, 8, 32>}, {pipeline_mode = #tpu.pipeline_mode<synchronous>, transform_indices = @transform_7, window_bounds = array<i64: 8, 32>}, {pipeline_mode = #tpu.pipeline_mode<synchronous>, transform_indices = @transform_8, window_bounds = array<i64: 8, 32>}]} {
    %c0 = arith.constant 0 : index
    %c0_0 = arith.constant 0 : index
    %0 = vector.load %arg1[%c0, %c0_0] : memref<64x32xbf16, #tpu.memory_space<vmem>>, vector<64x32xbf16>
    %c0_1 = arith.constant 0 : index
    %c0_2 = arith.constant 0 : index
    %1 = vector.load %arg2[%c0_1, %c0_2] : memref<32x128xbf16, #tpu.memory_space<vmem>>, vector<32x128xbf16>
    %cst = arith.constant dense<0.000000e+00> : vector<64x128xf32>
    %2 = tpu.matmul %0, %1, %cst {dimension_numbers = #tpu.dot_dimension_numbers<[1], [0], [0], [1], [0, 0, 1, 1], [], []>} : vector<64x32xbf16>, vector<32x128xbf16>, vector<64x128xf32> -> vector<64x128xf32>
    %c0_3 = arith.constant 0 : index
    %c0_4 = arith.constant 0 : index
    %3 = vector.load %arg4[%c0_3, %c0_4] : memref<1x128xf32, #tpu.memory_space<vmem>>, vector<1x128xf32>
    %4 = vector.broadcast %3 : vector<1x128xf32> to vector<64x128xf32>
    %5 = arith.addf %2, %4 : vector<64x128xf32>
    %c0_5 = arith.constant 0 : index
    %c0_6 = arith.constant 0 : index
    %6 = vector.load %arg10[%c0_5, %c0_6] : memref<64x128xf32, #tpu.memory_space<vmem>>, vector<64x128xf32>
    tpu.vector_store %arg10[%c0_5, %c0_6], %5 {strides = array<i32>} : memref<64x128xf32, #tpu.memory_space<vmem>>, vector<64x128xf32>,
    %c0_7 = arith.constant 0 : index
    %c0_8 = arith.constant 0 : index
    %7 = vector.load %arg5[%c0_7, %c0_8] : memref<8x32xf32, #tpu.memory_space<vmem>>, vector<8x32xf32>
    %c0_9 = arith.constant 0 : index
    %c0_10 = arith.constant 0 : index
    %8 = vector.load %arg11[%c0_9, %c0_10] : memref<8x32xf32, #tpu.memory_space<vmem>>, vector<8x32xf32>
    tpu.vector_store %arg11[%c0_9, %c0_10], %7 {strides = array<i32>} : memref<8x32xf32, #tpu.memory_space<vmem>>, vector<8x32xf32>,
    %c0_11 = arith.constant 0 : index
    %c0_12 = arith.constant 0 : index
    %9 = vector.load %arg6[%c0_11, %c0_12] : memref<8x32xf32, #tpu.memory_space<vmem>>, vector<8x32xf32>
    %c0_13 = arith.constant 0 : index
    %c0_14 = arith.constant 0 : index
    %10 = vector.load %arg12[%c0_13, %c0_14] : memref<8x32xf32, #tpu.memory_space<vmem>>, vector<8x32xf32>
    tpu.vector_store %arg12[%c0_13, %c0_14], %9 {strides = array<i32>} : memref<8x32xf32, #tpu.memory_space<vmem>>, vector<8x32xf32>,
    %11 = tpu.iota {dimensions = array<i32: 1>} : vector<8x128xi32>
    %c64_i32 = arith.constant 64 : i32
    %12 = vector.broadcast %c64_i32 : i32 to vector<8x128xi32>
    %13 = arith.cmpi sge, %11, %12 : vector<8x128xi32>
    %c96_i32 = arith.constant 96 : i32
    %14 = vector.broadcast %c96_i32 : i32 to vector<8x128xi32>
    %15 = arith.cmpi slt, %11, %14 : vector<8x128xi32>
    %16 = arith.andi %13, %15 : vector<8x128xi1>
    %c0_i32 = arith.constant 0 : i32
    %c0_15 = arith.constant 0 : index
    %c0_16 = arith.constant 0 : index
    %17 = vector.load %arg11[%c0_15, %c0_16] : memref<8x32xf32, #tpu.memory_space<vmem>>, vector<8x32xf32>
    %c0_17 = arith.constant 0 : index
    %c0_18 = arith.constant 0 : index
    %18 = vector.load %arg12[%c0_17, %c0_18] : memref<8x32xf32, #tpu.memory_space<vmem>>, vector<8x32xf32>
    %c8_i32 = arith.constant 8 : i32
    %19 = arith.muli %c0_i32, %c8_i32 : i32
    %20 = tpu.assume_multiple %19, 8 : i32
    %21 = arith.index_cast %20 : i32 to index
    %c0_19 = arith.constant 0 : index
    %22 = vector.load %arg10[%21, %c0_19] : memref<64x128xf32, #tpu.memory_space<vmem>>, vector<8x128xf32>
    %23 = arith.truncf %17 : vector<8x32xf32> to vector<8x32xbf16>
    %c0_20 = arith.constant 0 : index
    %c0_21 = arith.constant 0 : index
    %24 = vector.load %arg3[%c0_20, %c0_21] : memref<32x128xbf16, #tpu.memory_space<vmem>>, vector<32x128xbf16>
    %cst_22 = arith.constant dense<0.000000e+00> : vector<8x128xf32>
    %25 = tpu.matmul %23, %24, %cst_22 {dimension_numbers = #tpu.dot_dimension_numbers<[1], [0], [0], [1], [0, 0, 1, 1], [], []>} : vector<8x32xbf16>, vector<32x128xbf16>, vector<8x128xf32> -> vector<8x128xf32>
    %26 = arith.addf %22, %25 : vector<8x128xf32>
    %27 = math.tanh %26 : vector<8x128xf32>
    %28 = arith.negf %26 : vector<8x128xf32>
    %29 = math.exp %28 : vector<8x128xf32>
    %cst_23 = arith.constant 1.000000e+00 : f32
    %30 = vector.broadcast %cst_23 : f32 to vector<8x128xf32>
    %31 = arith.addf %30, %29 : vector<8x128xf32>
    %32 = arith.divf %30, %31 : vector<8x128xf32>
    %33 = arith.select %16, %27, %32 : vector<8x128xi1>, vector<8x128xf32>
    %34 = vector.extract_strided_slice %33 {offsets = [0, 0], sizes = [8, 32], strides = [1, 1]} : vector<8x128xf32> to vector<8x32xf32>
    %35 = vector.extract_strided_slice %33 {offsets = [0, 32], sizes = [8, 32], strides = [1, 1]} : vector<8x128xf32> to vector<8x32xf32>
    %36 = vector.extract_strided_slice %33 {offsets = [0, 64], sizes = [8, 32], strides = [1, 1]} : vector<8x128xf32> to vector<8x32xf32>
    %37 = vector.extract_strided_slice %33 {offsets = [0, 96], sizes = [8, 32], strides = [1, 1]} : vector<8x128xf32> to vector<8x32xf32>
    %38 = arith.mulf %35, %18 : vector<8x32xf32>
    %39 = arith.mulf %34, %36 : vector<8x32xf32>
    %40 = arith.addf %38, %39 : vector<8x32xf32>
    %41 = math.tanh %40 : vector<8x32xf32>
    %42 = arith.mulf %37, %41 : vector<8x32xf32>
    %c0_24 = arith.constant 0 : index
    %c0_25 = arith.constant 0 : index
    %43 = vector.load %arg12[%c0_24, %c0_25] : memref<8x32xf32, #tpu.memory_space<vmem>>, vector<8x32xf32>
    tpu.vector_store %arg12[%c0_24, %c0_25], %40 {strides = array<i32>} : memref<8x32xf32, #tpu.memory_space<vmem>>, vector<8x32xf32>,
    %c0_26 = arith.constant 0 : index
    %c0_27 = arith.constant 0 : index
    %44 = vector.load %arg11[%c0_26, %c0_27] : memref<8x32xf32, #tpu.memory_space<vmem>>, vector<8x32xf32>
    tpu.vector_store %arg11[%c0_26, %c0_27], %42 {strides = array<i32>} : memref<8x32xf32, #tpu.memory_space<vmem>>, vector<8x32xf32>,
    %45 = arith.index_cast %c0_i32 : i32 to index
    %c0_28 = arith.constant 0 : index
    %c0_29 = arith.constant 0 : index
    %46 = vector.load %arg7[%45, %c0_28, %c0_29] : memref<8x8x32xf32, #tpu.memory_space<vmem>>, vector<1x8x32xf32>
    %47 = vector.shape_cast %46 : vector<1x8x32xf32> to vector<8x32xf32>
    %48 = vector.shape_cast %42 : vector<8x32xf32> to vector<1x8x32xf32>
    tpu.vector_store %arg7[%45, %c0_28, %c0_29], %48 {strides = array<i32>} : memref<8x8x32xf32, #tpu.memory_space<vmem>>, vector<1x8x32xf32>,
    %c1_i32 = arith.constant 1 : i32
    %c0_30 = arith.constant 0 : index
    %c0_31 = arith.constant 0 : index
    %49 = vector.load %arg11[%c0_30, %c0_31] : memref<8x32xf32, #tpu.memory_space<vmem>>, vector<8x32xf32>
    %c0_32 = arith.constant 0 : index
    %c0_33 = arith.constant 0 : index
    %50 = vector.load %arg12[%c0_32, %c0_33] : memref<8x32xf32, #tpu.memory_space<vmem>>, vector<8x32xf32>
    %c8_i32_34 = arith.constant 8 : i32
    %51 = arith.muli %c1_i32, %c8_i32_34 : i32
    %52 = tpu.assume_multiple %51, 8 : i32
    %53 = arith.index_cast %52 : i32 to index
    %c0_35 = arith.constant 0 : index
    %54 = vector.load %arg10[%53, %c0_35] : memref<64x128xf32, #tpu.memory_space<vmem>>, vector<8x128xf32>
    %55 = arith.truncf %49 : vector<8x32xf32> to vector<8x32xbf16>
    %c0_36 = arith.constant 0 : index
    %c0_37 = arith.constant 0 : index
    %56 = vector.load %arg3[%c0_36, %c0_37] : memref<32x128xbf16, #tpu.memory_space<vmem>>, vector<32x128xbf16>
    %cst_38 = arith.constant dense<0.000000e+00> : vector<8x128xf32>
    %57 = tpu.matmul %55, %56, %cst_38 {dimension_numbers = #tpu.dot_dimension_numbers<[1], [0], [0], [1], [0, 0, 1, 1], [], []>} : vector<8x32xbf16>, vector<32x128xbf16>, vector<8x128xf32> -> vector<8x128xf32>
    %58 = arith.addf %54, %57 : vector<8x128xf32>
    %59 = math.tanh %58 : vector<8x128xf32>
    %60 = arith.negf %58 : vector<8x128xf32>
    %61 = math.exp %60 : vector<8x128xf32>
    %cst_39 = arith.constant 1.000000e+00 : f32
    %62 = vector.broadcast %cst_39 : f32 to vector<8x128xf32>
    %63 = arith.addf %62, %61 : vector<8x128xf32>
    %64 = arith.divf %62, %63 : vector<8x128xf32>
    %65 = arith.select %16, %59, %64 : vector<8x128xi1>, vector<8x128xf32>
    %66 = vector.extract_strided_slice %65 {offsets = [0, 0], sizes = [8, 32], strides = [1, 1]} : vector<8x128xf32> to vector<8x32xf32>
    %67 = vector.extract_strided_slice %65 {offsets = [0, 32], sizes = [8, 32], strides = [1, 1]} : vector<8x128xf32> to vector<8x32xf32>
    %68 = vector.extract_strided_slice %65 {offsets = [0, 64], sizes = [8, 32], strides = [1, 1]} : vector<8x128xf32> to vector<8x32xf32>
    %69 = vector.extract_strided_slice %65 {offsets = [0, 96], sizes = [8, 32], strides = [1, 1]} : vector<8x128xf32> to vector<8x32xf32>
    %70 = arith.mulf %67, %50 : vector<8x32xf32>
    %71 = arith.mulf %66, %68 : vector<8x32xf32>
    %72 = arith.addf %70, %71 : vector<8x32xf32>
    %73 = math.tanh %72 : vector<8x32xf32>
    %74 = arith.mulf %69, %73 : vector<8x32xf32>
    %c0_40 = arith.constant 0 : index
    %c0_41 = arith.constant 0 : index
    %75 = vector.load %arg12[%c0_40, %c0_41] : memref<8x32xf32, #tpu.memory_space<vmem>>, vector<8x32xf32>
    tpu.vector_store %arg12[%c0_40, %c0_41], %72 {strides = array<i32>} : memref<8x32xf32, #tpu.memory_space<vmem>>, vector<8x32xf32>,
    %c0_42 = arith.constant 0 : index
    %c0_43 = arith.constant 0 : index
    %76 = vector.load %arg11[%c0_42, %c0_43] : memref<8x32xf32, #tpu.memory_space<vmem>>, vector<8x32xf32>
    tpu.vector_store %arg11[%c0_42, %c0_43], %74 {strides = array<i32>} : memref<8x32xf32, #tpu.memory_space<vmem>>, vector<8x32xf32>,
    %77 = arith.index_cast %c1_i32 : i32 to index
    %c0_44 = arith.constant 0 : index
    %c0_45 = arith.constant 0 : index
    %78 = vector.load %arg7[%77, %c0_44, %c0_45] : memref<8x8x32xf32, #tpu.memory_space<vmem>>, vector<1x8x32xf32>
    %79 = vector.shape_cast %78 : vector<1x8x32xf32> to vector<8x32xf32>
    %80 = vector.shape_cast %74 : vector<8x32xf32> to vector<1x8x32xf32>
    tpu.vector_store %arg7[%77, %c0_44, %c0_45], %80 {strides = array<i32>} : memref<8x8x32xf32, #tpu.memory_space<vmem>>, vector<1x8x32xf32>,
    %c2_i32 = arith.constant 2 : i32
    %c0_46 = arith.constant 0 : index
    %c0_47 = arith.constant 0 : index
    %81 = vector.load %arg11[%c0_46, %c0_47] : memref<8x32xf32, #tpu.memory_space<vmem>>, vector<8x32xf32>
    %c0_48 = arith.constant 0 : index
    %c0_49 = arith.constant 0 : index
    %82 = vector.load %arg12[%c0_48, %c0_49] : memref<8x32xf32, #tpu.memory_space<vmem>>, vector<8x32xf32>
    %c8_i32_50 = arith.constant 8 : i32
    %83 = arith.muli %c2_i32, %c8_i32_50 : i32
    %84 = tpu.assume_multiple %83, 8 : i32
    %85 = arith.index_cast %84 : i32 to index
    %c0_51 = arith.constant 0 : index
    %86 = vector.load %arg10[%85, %c0_51] : memref<64x128xf32, #tpu.memory_space<vmem>>, vector<8x128xf32>
    %87 = arith.truncf %81 : vector<8x32xf32> to vector<8x32xbf16>
    %c0_52 = arith.constant 0 : index
    %c0_53 = arith.constant 0 : index
    %88 = vector.load %arg3[%c0_52, %c0_53] : memref<32x128xbf16, #tpu.memory_space<vmem>>, vector<32x128xbf16>
    %cst_54 = arith.constant dense<0.000000e+00> : vector<8x128xf32>
    %89 = tpu.matmul %87, %88, %cst_54 {dimension_numbers = #tpu.dot_dimension_numbers<[1], [0], [0], [1], [0, 0, 1, 1], [], []>} : vector<8x32xbf16>, vector<32x128xbf16>, vector<8x128xf32> -> vector<8x128xf32>
    %90 = arith.addf %86, %89 : vector<8x128xf32>
    %91 = math.tanh %90 : vector<8x128xf32>
    %92 = arith.negf %90 : vector<8x128xf32>
    %93 = math.exp %92 : vector<8x128xf32>
    %cst_55 = arith.constant 1.000000e+00 : f32
    %94 = vector.broadcast %cst_55 : f32 to vector<8x128xf32>
    %95 = arith.addf %94, %93 : vector<8x128xf32>
    %96 = arith.divf %94, %95 : vector<8x128xf32>
    %97 = arith.select %16, %91, %96 : vector<8x128xi1>, vector<8x128xf32>
    %98 = vector.extract_strided_slice %97 {offsets = [0, 0], sizes = [8, 32], strides = [1, 1]} : vector<8x128xf32> to vector<8x32xf32>
    %99 = vector.extract_strided_slice %97 {offsets = [0, 32], sizes = [8, 32], strides = [1, 1]} : vector<8x128xf32> to vector<8x32xf32>
    %100 = vector.extract_strided_slice %97 {offsets = [0, 64], sizes = [8, 32], strides = [1, 1]} : vector<8x128xf32> to vector<8x32xf32>
    %101 = vector.extract_strided_slice %97 {offsets = [0, 96], sizes = [8, 32], strides = [1, 1]} : vector<8x128xf32> to vector<8x32xf32>
    %102 = arith.mulf %99, %82 : vector<8x32xf32>
    %103 = arith.mulf %98, %100 : vector<8x32xf32>
    %104 = arith.addf %102, %103 : vector<8x32xf32>
    %105 = math.tanh %104 : vector<8x32xf32>
    %106 = arith.mulf %101, %105 : vector<8x32xf32>
    %c0_56 = arith.constant 0 : index
    %c0_57 = arith.constant 0 : index
    %107 = vector.load %arg12[%c0_56, %c0_57] : memref<8x32xf32, #tpu.memory_space<vmem>>, vector<8x32xf32>
    tpu.vector_store %arg12[%c0_56, %c0_57], %104 {strides = array<i32>} : memref<8x32xf32, #tpu.memory_space<vmem>>, vector<8x32xf32>,
    %c0_58 = arith.constant 0 : index
    %c0_59 = arith.constant 0 : index
    %108 = vector.load %arg11[%c0_58, %c0_59] : memref<8x32xf32, #tpu.memory_space<vmem>>, vector<8x32xf32>
    tpu.vector_store %arg11[%c0_58, %c0_59], %106 {strides = array<i32>} : memref<8x32xf32, #tpu.memory_space<vmem>>, vector<8x32xf32>,
    %109 = arith.index_cast %c2_i32 : i32 to index
    %c0_60 = arith.constant 0 : index
    %c0_61 = arith.constant 0 : index
    %110 = vector.load %arg7[%109, %c0_60, %c0_61] : memref<8x8x32xf32, #tpu.memory_space<vmem>>, vector<1x8x32xf32>
    %111 = vector.shape_cast %110 : vector<1x8x32xf32> to vector<8x32xf32>
    %112 = vector.shape_cast %106 : vector<8x32xf32> to vector<1x8x32xf32>
    tpu.vector_store %arg7[%109, %c0_60, %c0_61], %112 {strides = array<i32>} : memref<8x8x32xf32, #tpu.memory_space<vmem>>, vector<1x8x32xf32>,
    %c3_i32 = arith.constant 3 : i32
    %c0_62 = arith.constant 0 : index
    %c0_63 = arith.constant 0 : index
    %113 = vector.load %arg11[%c0_62, %c0_63] : memref<8x32xf32, #tpu.memory_space<vmem>>, vector<8x32xf32>
    %c0_64 = arith.constant 0 : index
    %c0_65 = arith.constant 0 : index
    %114 = vector.load %arg12[%c0_64, %c0_65] : memref<8x32xf32, #tpu.memory_space<vmem>>, vector<8x32xf32>
    %c8_i32_66 = arith.constant 8 : i32
    %115 = arith.muli %c3_i32, %c8_i32_66 : i32
    %116 = tpu.assume_multiple %115, 8 : i32
    %117 = arith.index_cast %116 : i32 to index
    %c0_67 = arith.constant 0 : index
    %118 = vector.load %arg10[%117, %c0_67] : memref<64x128xf32, #tpu.memory_space<vmem>>, vector<8x128xf32>
    %119 = arith.truncf %113 : vector<8x32xf32> to vector<8x32xbf16>
    %c0_68 = arith.constant 0 : index
    %c0_69 = arith.constant 0 : index
    %120 = vector.load %arg3[%c0_68, %c0_69] : memref<32x128xbf16, #tpu.memory_space<vmem>>, vector<32x128xbf16>
    %cst_70 = arith.constant dense<0.000000e+00> : vector<8x128xf32>
    %121 = tpu.matmul %119, %120, %cst_70 {dimension_numbers = #tpu.dot_dimension_numbers<[1], [0], [0], [1], [0, 0, 1, 1], [], []>} : vector<8x32xbf16>, vector<32x128xbf16>, vector<8x128xf32> -> vector<8x128xf32>
    %122 = arith.addf %118, %121 : vector<8x128xf32>
    %123 = math.tanh %122 : vector<8x128xf32>
    %124 = arith.negf %122 : vector<8x128xf32>
    %125 = math.exp %124 : vector<8x128xf32>
    %cst_71 = arith.constant 1.000000e+00 : f32
    %126 = vector.broadcast %cst_71 : f32 to vector<8x128xf32>
    %127 = arith.addf %126, %125 : vector<8x128xf32>
    %128 = arith.divf %126, %127 : vector<8x128xf32>
    %129 = arith.select %16, %123, %128 : vector<8x128xi1>, vector<8x128xf32>
    %130 = vector.extract_strided_slice %129 {offsets = [0, 0], sizes = [8, 32], strides = [1, 1]} : vector<8x128xf32> to vector<8x32xf32>
    %131 = vector.extract_strided_slice %129 {offsets = [0, 32], sizes = [8, 32], strides = [1, 1]} : vector<8x128xf32> to vector<8x32xf32>
    %132 = vector.extract_strided_slice %129 {offsets = [0, 64], sizes = [8, 32], strides = [1, 1]} : vector<8x128xf32> to vector<8x32xf32>
    %133 = vector.extract_strided_slice %129 {offsets = [0, 96], sizes = [8, 32], strides = [1, 1]} : vector<8x128xf32> to vector<8x32xf32>
    %134 = arith.mulf %131, %114 : vector<8x32xf32>
    %135 = arith.mulf %130, %132 : vector<8x32xf32>
    %136 = arith.addf %134, %135 : vector<8x32xf32>
    %137 = math.tanh %136 : vector<8x32xf32>
    %138 = arith.mulf %133, %137 : vector<8x32xf32>
    %c0_72 = arith.constant 0 : index
    %c0_73 = arith.constant 0 : index
    %139 = vector.load %arg12[%c0_72, %c0_73] : memref<8x32xf32, #tpu.memory_space<vmem>>, vector<8x32xf32>
    tpu.vector_store %arg12[%c0_72, %c0_73], %136 {strides = array<i32>} : memref<8x32xf32, #tpu.memory_space<vmem>>, vector<8x32xf32>,
    %c0_74 = arith.constant 0 : index
    %c0_75 = arith.constant 0 : index
    %140 = vector.load %arg11[%c0_74, %c0_75] : memref<8x32xf32, #tpu.memory_space<vmem>>, vector<8x32xf32>
    tpu.vector_store %arg11[%c0_74, %c0_75], %138 {strides = array<i32>} : memref<8x32xf32, #tpu.memory_space<vmem>>, vector<8x32xf32>,
    %141 = arith.index_cast %c3_i32 : i32 to index
    %c0_76 = arith.constant 0 : index
    %c0_77 = arith.constant 0 : index
    %142 = vector.load %arg7[%141, %c0_76, %c0_77] : memref<8x8x32xf32, #tpu.memory_space<vmem>>, vector<1x8x32xf32>
    %143 = vector.shape_cast %142 : vector<1x8x32xf32> to vector<8x32xf32>
    %144 = vector.shape_cast %138 : vector<8x32xf32> to vector<1x8x32xf32>
    tpu.vector_store %arg7[%141, %c0_76, %c0_77], %144 {strides = array<i32>} : memref<8x8x32xf32, #tpu.memory_space<vmem>>, vector<1x8x32xf32>,
    %c4_i32 = arith.constant 4 : i32
    %c0_78 = arith.constant 0 : index
    %c0_79 = arith.constant 0 : index
    %145 = vector.load %arg11[%c0_78, %c0_79] : memref<8x32xf32, #tpu.memory_space<vmem>>, vector<8x32xf32>
    %c0_80 = arith.constant 0 : index
    %c0_81 = arith.constant 0 : index
    %146 = vector.load %arg12[%c0_80, %c0_81] : memref<8x32xf32, #tpu.memory_space<vmem>>, vector<8x32xf32>
    %c8_i32_82 = arith.constant 8 : i32
    %147 = arith.muli %c4_i32, %c8_i32_82 : i32
    %148 = tpu.assume_multiple %147, 8 : i32
    %149 = arith.index_cast %148 : i32 to index
    %c0_83 = arith.constant 0 : index
    %150 = vector.load %arg10[%149, %c0_83] : memref<64x128xf32, #tpu.memory_space<vmem>>, vector<8x128xf32>
    %151 = arith.truncf %145 : vector<8x32xf32> to vector<8x32xbf16>
    %c0_84 = arith.constant 0 : index
    %c0_85 = arith.constant 0 : index
    %152 = vector.load %arg3[%c0_84, %c0_85] : memref<32x128xbf16, #tpu.memory_space<vmem>>, vector<32x128xbf16>
    %cst_86 = arith.constant dense<0.000000e+00> : vector<8x128xf32>
    %153 = tpu.matmul %151, %152, %cst_86 {dimension_numbers = #tpu.dot_dimension_numbers<[1], [0], [0], [1], [0, 0, 1, 1], [], []>} : vector<8x32xbf16>, vector<32x128xbf16>, vector<8x128xf32> -> vector<8x128xf32>
    %154 = arith.addf %150, %153 : vector<8x128xf32>
    %155 = math.tanh %154 : vector<8x128xf32>
    %156 = arith.negf %154 : vector<8x128xf32>
    %157 = math.exp %156 : vector<8x128xf32>
    %cst_87 = arith.constant 1.000000e+00 : f32
    %158 = vector.broadcast %cst_87 : f32 to vector<8x128xf32>
    %159 = arith.addf %158, %157 : vector<8x128xf32>
    %160 = arith.divf %158, %159 : vector<8x128xf32>
    %161 = arith.select %16, %155, %160 : vector<8x128xi1>, vector<8x128xf32>
    %162 = vector.extract_strided_slice %161 {offsets = [0, 0], sizes = [8, 32], strides = [1, 1]} : vector<8x128xf32> to vector<8x32xf32>
    %163 = vector.extract_strided_slice %161 {offsets = [0, 32], sizes = [8, 32], strides = [1, 1]} : vector<8x128xf32> to vector<8x32xf32>
    %164 = vector.extract_strided_slice %161 {offsets = [0, 64], sizes = [8, 32], strides = [1, 1]} : vector<8x128xf32> to vector<8x32xf32>
    %165 = vector.extract_strided_slice %161 {offsets = [0, 96], sizes = [8, 32], strides = [1, 1]} : vector<8x128xf32> to vector<8x32xf32>
    %166 = arith.mulf %163, %146 : vector<8x32xf32>
    %167 = arith.mulf %162, %164 : vector<8x32xf32>
    %168 = arith.addf %166, %167 : vector<8x32xf32>
    %169 = math.tanh %168 : vector<8x32xf32>
    %170 = arith.mulf %165, %169 : vector<8x32xf32>
    %c0_88 = arith.constant 0 : index
    %c0_89 = arith.constant 0 : index
    %171 = vector.load %arg12[%c0_88, %c0_89] : memref<8x32xf32, #tpu.memory_space<vmem>>, vector<8x32xf32>
    tpu.vector_store %arg12[%c0_88, %c0_89], %168 {strides = array<i32>} : memref<8x32xf32, #tpu.memory_space<vmem>>, vector<8x32xf32>,
    %c0_90 = arith.constant 0 : index
    %c0_91 = arith.constant 0 : index
    %172 = vector.load %arg11[%c0_90, %c0_91] : memref<8x32xf32, #tpu.memory_space<vmem>>, vector<8x32xf32>
    tpu.vector_store %arg11[%c0_90, %c0_91], %170 {strides = array<i32>} : memref<8x32xf32, #tpu.memory_space<vmem>>, vector<8x32xf32>,
    %173 = arith.index_cast %c4_i32 : i32 to index
    %c0_92 = arith.constant 0 : index
    %c0_93 = arith.constant 0 : index
    %174 = vector.load %arg7[%173, %c0_92, %c0_93] : memref<8x8x32xf32, #tpu.memory_space<vmem>>, vector<1x8x32xf32>
    %175 = vector.shape_cast %174 : vector<1x8x32xf32> to vector<8x32xf32>
    %176 = vector.shape_cast %170 : vector<8x32xf32> to vector<1x8x32xf32>
    tpu.vector_store %arg7[%173, %c0_92, %c0_93], %176 {strides = array<i32>} : memref<8x8x32xf32, #tpu.memory_space<vmem>>, vector<1x8x32xf32>,
    %c5_i32 = arith.constant 5 : i32
    %c0_94 = arith.constant 0 : index
    %c0_95 = arith.constant 0 : index
    %177 = vector.load %arg11[%c0_94, %c0_95] : memref<8x32xf32, #tpu.memory_space<vmem>>, vector<8x32xf32>
    %c0_96 = arith.constant 0 : index
    %c0_97 = arith.constant 0 : index
    %178 = vector.load %arg12[%c0_96, %c0_97] : memref<8x32xf32, #tpu.memory_space<vmem>>, vector<8x32xf32>
    %c8_i32_98 = arith.constant 8 : i32
    %179 = arith.muli %c5_i32, %c8_i32_98 : i32
    %180 = tpu.assume_multiple %179, 8 : i32
    %181 = arith.index_cast %180 : i32 to index
    %c0_99 = arith.constant 0 : index
    %182 = vector.load %arg10[%181, %c0_99] : memref<64x128xf32, #tpu.memory_space<vmem>>, vector<8x128xf32>
    %183 = arith.truncf %177 : vector<8x32xf32> to vector<8x32xbf16>
    %c0_100 = arith.constant 0 : index
    %c0_101 = arith.constant 0 : index
    %184 = vector.load %arg3[%c0_100, %c0_101] : memref<32x128xbf16, #tpu.memory_space<vmem>>, vector<32x128xbf16>
    %cst_102 = arith.constant dense<0.000000e+00> : vector<8x128xf32>
    %185 = tpu.matmul %183, %184, %cst_102 {dimension_numbers = #tpu.dot_dimension_numbers<[1], [0], [0], [1], [0, 0, 1, 1], [], []>} : vector<8x32xbf16>, vector<32x128xbf16>, vector<8x128xf32> -> vector<8x128xf32>
    %186 = arith.addf %182, %185 : vector<8x128xf32>
    %187 = math.tanh %186 : vector<8x128xf32>
    %188 = arith.negf %186 : vector<8x128xf32>
    %189 = math.exp %188 : vector<8x128xf32>
    %cst_103 = arith.constant 1.000000e+00 : f32
    %190 = vector.broadcast %cst_103 : f32 to vector<8x128xf32>
    %191 = arith.addf %190, %189 : vector<8x128xf32>
    %192 = arith.divf %190, %191 : vector<8x128xf32>
    %193 = arith.select %16, %187, %192 : vector<8x128xi1>, vector<8x128xf32>
    %194 = vector.extract_strided_slice %193 {offsets = [0, 0], sizes = [8, 32], strides = [1, 1]} : vector<8x128xf32> to vector<8x32xf32>
    %195 = vector.extract_strided_slice %193 {offsets = [0, 32], sizes = [8, 32], strides = [1, 1]} : vector<8x128xf32> to vector<8x32xf32>
    %196 = vector.extract_strided_slice %193 {offsets = [0, 64], sizes = [8, 32], strides = [1, 1]} : vector<8x128xf32> to vector<8x32xf32>
    %197 = vector.extract_strided_slice %193 {offsets = [0, 96], sizes = [8, 32], strides = [1, 1]} : vector<8x128xf32> to vector<8x32xf32>
    %198 = arith.mulf %195, %178 : vector<8x32xf32>
    %199 = arith.mulf %194, %196 : vector<8x32xf32>
    %200 = arith.addf %198, %199 : vector<8x32xf32>
    %201 = math.tanh %200 : vector<8x32xf32>
    %202 = arith.mulf %197, %201 : vector<8x32xf32>
    %c0_104 = arith.constant 0 : index
    %c0_105 = arith.constant 0 : index
    %203 = vector.load %arg12[%c0_104, %c0_105] : memref<8x32xf32, #tpu.memory_space<vmem>>, vector<8x32xf32>
    tpu.vector_store %arg12[%c0_104, %c0_105], %200 {strides = array<i32>} : memref<8x32xf32, #tpu.memory_space<vmem>>, vector<8x32xf32>,
    %c0_106 = arith.constant 0 : index
    %c0_107 = arith.constant 0 : index
    %204 = vector.load %arg11[%c0_106, %c0_107] : memref<8x32xf32, #tpu.memory_space<vmem>>, vector<8x32xf32>
    tpu.vector_store %arg11[%c0_106, %c0_107], %202 {strides = array<i32>} : memref<8x32xf32, #tpu.memory_space<vmem>>, vector<8x32xf32>,
    %205 = arith.index_cast %c5_i32 : i32 to index
    %c0_108 = arith.constant 0 : index
    %c0_109 = arith.constant 0 : index
    %206 = vector.load %arg7[%205, %c0_108, %c0_109] : memref<8x8x32xf32, #tpu.memory_space<vmem>>, vector<1x8x32xf32>
    %207 = vector.shape_cast %206 : vector<1x8x32xf32> to vector<8x32xf32>
    %208 = vector.shape_cast %202 : vector<8x32xf32> to vector<1x8x32xf32>
    tpu.vector_store %arg7[%205, %c0_108, %c0_109], %208 {strides = array<i32>} : memref<8x8x32xf32, #tpu.memory_space<vmem>>, vector<1x8x32xf32>,
    %c6_i32 = arith.constant 6 : i32
    %c0_110 = arith.constant 0 : index
    %c0_111 = arith.constant 0 : index
    %209 = vector.load %arg11[%c0_110, %c0_111] : memref<8x32xf32, #tpu.memory_space<vmem>>, vector<8x32xf32>
    %c0_112 = arith.constant 0 : index
    %c0_113 = arith.constant 0 : index
    %210 = vector.load %arg12[%c0_112, %c0_113] : memref<8x32xf32, #tpu.memory_space<vmem>>, vector<8x32xf32>
    %c8_i32_114 = arith.constant 8 : i32
    %211 = arith.muli %c6_i32, %c8_i32_114 : i32
    %212 = tpu.assume_multiple %211, 8 : i32
    %213 = arith.index_cast %212 : i32 to index
    %c0_115 = arith.constant 0 : index
    %214 = vector.load %arg10[%213, %c0_115] : memref<64x128xf32, #tpu.memory_space<vmem>>, vector<8x128xf32>
    %215 = arith.truncf %209 : vector<8x32xf32> to vector<8x32xbf16>
    %c0_116 = arith.constant 0 : index
    %c0_117 = arith.constant 0 : index
    %216 = vector.load %arg3[%c0_116, %c0_117] : memref<32x128xbf16, #tpu.memory_space<vmem>>, vector<32x128xbf16>
    %cst_118 = arith.constant dense<0.000000e+00> : vector<8x128xf32>
    %217 = tpu.matmul %215, %216, %cst_118 {dimension_numbers = #tpu.dot_dimension_numbers<[1], [0], [0], [1], [0, 0, 1, 1], [], []>} : vector<8x32xbf16>, vector<32x128xbf16>, vector<8x128xf32> -> vector<8x128xf32>
    %218 = arith.addf %214, %217 : vector<8x128xf32>
    %219 = math.tanh %218 : vector<8x128xf32>
    %220 = arith.negf %218 : vector<8x128xf32>
    %221 = math.exp %220 : vector<8x128xf32>
    %cst_119 = arith.constant 1.000000e+00 : f32
    %222 = vector.broadcast %cst_119 : f32 to vector<8x128xf32>
    %223 = arith.addf %222, %221 : vector<8x128xf32>
    %224 = arith.divf %222, %223 : vector<8x128xf32>
    %225 = arith.select %16, %219, %224 : vector<8x128xi1>, vector<8x128xf32>
    %226 = vector.extract_strided_slice %225 {offsets = [0, 0], sizes = [8, 32], strides = [1, 1]} : vector<8x128xf32> to vector<8x32xf32>
    %227 = vector.extract_strided_slice %225 {offsets = [0, 32], sizes = [8, 32], strides = [1, 1]} : vector<8x128xf32> to vector<8x32xf32>
    %228 = vector.extract_strided_slice %225 {offsets = [0, 64], sizes = [8, 32], strides = [1, 1]} : vector<8x128xf32> to vector<8x32xf32>
    %229 = vector.extract_strided_slice %225 {offsets = [0, 96], sizes = [8, 32], strides = [1, 1]} : vector<8x128xf32> to vector<8x32xf32>
    %230 = arith.mulf %227, %210 : vector<8x32xf32>
    %231 = arith.mulf %226, %228 : vector<8x32xf32>
    %232 = arith.addf %230, %231 : vector<8x32xf32>
    %233 = math.tanh %232 : vector<8x32xf32>
    %234 = arith.mulf %229, %233 : vector<8x32xf32>
    %c0_120 = arith.constant 0 : index
    %c0_121 = arith.constant 0 : index
    %235 = vector.load %arg12[%c0_120, %c0_121] : memref<8x32xf32, #tpu.memory_space<vmem>>, vector<8x32xf32>
    tpu.vector_store %arg12[%c0_120, %c0_121], %232 {strides = array<i32>} : memref<8x32xf32, #tpu.memory_space<vmem>>, vector<8x32xf32>,
    %c0_122 = arith.constant 0 : index
    %c0_123 = arith.constant 0 : index
    %236 = vector.load %arg11[%c0_122, %c0_123] : memref<8x32xf32, #tpu.memory_space<vmem>>, vector<8x32xf32>
    tpu.vector_store %arg11[%c0_122, %c0_123], %234 {strides = array<i32>} : memref<8x32xf32, #tpu.memory_space<vmem>>, vector<8x32xf32>,
    %237 = arith.index_cast %c6_i32 : i32 to index
    %c0_124 = arith.constant 0 : index
    %c0_125 = arith.constant 0 : index
    %238 = vector.load %arg7[%237, %c0_124, %c0_125] : memref<8x8x32xf32, #tpu.memory_space<vmem>>, vector<1x8x32xf32>
    %239 = vector.shape_cast %238 : vector<1x8x32xf32> to vector<8x32xf32>
    %240 = vector.shape_cast %234 : vector<8x32xf32> to vector<1x8x32xf32>
    tpu.vector_store %arg7[%237, %c0_124, %c0_125], %240 {strides = array<i32>} : memref<8x8x32xf32, #tpu.memory_space<vmem>>, vector<1x8x32xf32>,
    %c7_i32 = arith.constant 7 : i32
    %c0_126 = arith.constant 0 : index
    %c0_127 = arith.constant 0 : index
    %241 = vector.load %arg11[%c0_126, %c0_127] : memref<8x32xf32, #tpu.memory_space<vmem>>, vector<8x32xf32>
    %c0_128 = arith.constant 0 : index
    %c0_129 = arith.constant 0 : index
    %242 = vector.load %arg12[%c0_128, %c0_129] : memref<8x32xf32, #tpu.memory_space<vmem>>, vector<8x32xf32>
    %c8_i32_130 = arith.constant 8 : i32
    %243 = arith.muli %c7_i32, %c8_i32_130 : i32
    %244 = tpu.assume_multiple %243, 8 : i32
    %245 = arith.index_cast %244 : i32 to index
    %c0_131 = arith.constant 0 : index
    %246 = vector.load %arg10[%245, %c0_131] : memref<64x128xf32, #tpu.memory_space<vmem>>, vector<8x128xf32>
    %247 = arith.truncf %241 : vector<8x32xf32> to vector<8x32xbf16>
    %c0_132 = arith.constant 0 : index
    %c0_133 = arith.constant 0 : index
    %248 = vector.load %arg3[%c0_132, %c0_133] : memref<32x128xbf16, #tpu.memory_space<vmem>>, vector<32x128xbf16>
    %cst_134 = arith.constant dense<0.000000e+00> : vector<8x128xf32>
    %249 = tpu.matmul %247, %248, %cst_134 {dimension_numbers = #tpu.dot_dimension_numbers<[1], [0], [0], [1], [0, 0, 1, 1], [], []>} : vector<8x32xbf16>, vector<32x128xbf16>, vector<8x128xf32> -> vector<8x128xf32>
    %250 = arith.addf %246, %249 : vector<8x128xf32>
    %251 = math.tanh %250 : vector<8x128xf32>
    %252 = arith.negf %250 : vector<8x128xf32>
    %253 = math.exp %252 : vector<8x128xf32>
    %cst_135 = arith.constant 1.000000e+00 : f32
    %254 = vector.broadcast %cst_135 : f32 to vector<8x128xf32>
    %255 = arith.addf %254, %253 : vector<8x128xf32>
    %256 = arith.divf %254, %255 : vector<8x128xf32>
    %257 = arith.select %16, %251, %256 : vector<8x128xi1>, vector<8x128xf32>
    %258 = vector.extract_strided_slice %257 {offsets = [0, 0], sizes = [8, 32], strides = [1, 1]} : vector<8x128xf32> to vector<8x32xf32>
    %259 = vector.extract_strided_slice %257 {offsets = [0, 32], sizes = [8, 32], strides = [1, 1]} : vector<8x128xf32> to vector<8x32xf32>
    %260 = vector.extract_strided_slice %257 {offsets = [0, 64], sizes = [8, 32], strides = [1, 1]} : vector<8x128xf32> to vector<8x32xf32>
    %261 = vector.extract_strided_slice %257 {offsets = [0, 96], sizes = [8, 32], strides = [1, 1]} : vector<8x128xf32> to vector<8x32xf32>
    %262 = arith.mulf %259, %242 : vector<8x32xf32>
    %263 = arith.mulf %258, %260 : vector<8x32xf32>
    %264 = arith.addf %262, %263 : vector<8x32xf32>
    %265 = math.tanh %264 : vector<8x32xf32>
    %266 = arith.mulf %261, %265 : vector<8x32xf32>
    %c0_136 = arith.constant 0 : index
    %c0_137 = arith.constant 0 : index
    %267 = vector.load %arg12[%c0_136, %c0_137] : memref<8x32xf32, #tpu.memory_space<vmem>>, vector<8x32xf32>
    tpu.vector_store %arg12[%c0_136, %c0_137], %264 {strides = array<i32>} : memref<8x32xf32, #tpu.memory_space<vmem>>, vector<8x32xf32>,
    %c0_138 = arith.constant 0 : index
    %c0_139 = arith.constant 0 : index
    %268 = vector.load %arg11[%c0_138, %c0_139] : memref<8x32xf32, #tpu.memory_space<vmem>>, vector<8x32xf32>
    tpu.vector_store %arg11[%c0_138, %c0_139], %266 {strides = array<i32>} : memref<8x32xf32, #tpu.memory_space<vmem>>, vector<8x32xf32>,
    %269 = arith.index_cast %c7_i32 : i32 to index
    %c0_140 = arith.constant 0 : index
    %c0_141 = arith.constant 0 : index
    %270 = vector.load %arg7[%269, %c0_140, %c0_141] : memref<8x8x32xf32, #tpu.memory_space<vmem>>, vector<1x8x32xf32>
    %271 = vector.shape_cast %270 : vector<1x8x32xf32> to vector<8x32xf32>
    %272 = vector.shape_cast %266 : vector<8x32xf32> to vector<1x8x32xf32>
    tpu.vector_store %arg7[%269, %c0_140, %c0_141], %272 {strides = array<i32>} : memref<8x8x32xf32, #tpu.memory_space<vmem>>, vector<1x8x32xf32>,
    %c8_i32_142 = arith.constant 8 : i32
    %c0_143 = arith.constant 0 : index
    %c0_144 = arith.constant 0 : index
    %273 = vector.load %arg11[%c0_143, %c0_144] : memref<8x32xf32, #tpu.memory_space<vmem>>, vector<8x32xf32>
    %c0_145 = arith.constant 0 : index
    %c0_146 = arith.constant 0 : index
    %274 = vector.load %arg8[%c0_145, %c0_146] : memref<8x32xf32, #tpu.memory_space<vmem>>, vector<8x32xf32>
    tpu.vector_store %arg8[%c0_145, %c0_146], %273 {strides = array<i32>} : memref<8x32xf32, #tpu.memory_space<vmem>>, vector<8x32xf32>,
    %c0_147 = arith.constant 0 : index
    %c0_148 = arith.constant 0 : index
    %275 = vector.load %arg12[%c0_147, %c0_148] : memref<8x32xf32, #tpu.memory_space<vmem>>, vector<8x32xf32>
    %c0_149 = arith.constant 0 : index
    %c0_150 = arith.constant 0 : index
    %276 = vector.load %arg9[%c0_149, %c0_150] : memref<8x32xf32, #tpu.memory_space<vmem>>, vector<8x32xf32>
    tpu.vector_store %arg9[%c0_149, %c0_150], %275 {strides = array<i32>} : memref<8x32xf32, #tpu.memory_space<vmem>>, vector<8x32xf32>,
    return
  }
  func.func @transform_0(%arg0: i32) -> (i32, i32) {
    %c0_i32 = arith.constant 0 : i32
    %c0_i32_0 = arith.constant 0 : i32
    %c0_i32_1 = arith.constant 0 : i32
    return %c0_i32, %c0_i32_0 : i32, i32
  }
  func.func @transform_1(%arg0: i32) -> (i32, i32) {
    %c0_i32 = arith.constant 0 : i32
    %c0_i32_0 = arith.constant 0 : i32
    %c0_i32_1 = arith.constant 0 : i32
    return %c0_i32, %c0_i32_0 : i32, i32
  }
  func.func @transform_2(%arg0: i32) -> (i32, i32) {
    %c0_i32 = arith.constant 0 : i32
    %c0_i32_0 = arith.constant 0 : i32
    %c0_i32_1 = arith.constant 0 : i32
    return %c0_i32, %c0_i32_0 : i32, i32
  }
  func.func @transform_3(%arg0: i32) -> (i32, i32) {
    %c0_i32 = arith.constant 0 : i32
    %c0_i32_0 = arith.constant 0 : i32
    %c0_i32_1 = arith.constant 0 : i32
    return %c0_i32, %c0_i32_0 : i32, i32
  }
  func.func @transform_4(%arg0: i32) -> (i32, i32) {
    %c0_i32 = arith.constant 0 : i32
    %c0_i32_0 = arith.constant 0 : i32
    %c0_i32_1 = arith.constant 0 : i32
    return %c0_i32, %c0_i32_0 : i32, i32
  }
  func.func @transform_5(%arg0: i32) -> (i32, i32) {
    %c0_i32 = arith.constant 0 : i32
    %c0_i32_0 = arith.constant 0 : i32
    %c0_i32_1 = arith.constant 0 : i32
    return %c0_i32, %c0_i32_0 : i32, i32
  }
  func.func @transform_6(%arg0: i32) -> (i32, i32, i32) {
    %c0_i32 = arith.constant 0 : i32
    %c0_i32_0 = arith.constant 0 : i32
    %c0_i32_1 = arith.constant 0 : i32
    %c0_i32_2 = arith.constant 0 : i32
    return %c0_i32, %c0_i32_0, %c0_i32_1 : i32, i32, i32
  }
  func.func @transform_7(%arg0: i32) -> (i32, i32) {
    %c0_i32 = arith.constant 0 : i32
    %c0_i32_0 = arith.constant 0 : i32
    %c0_i32_1 = arith.constant 0 : i32
    return %c0_i32, %c0_i32_0 : i32, i32
  }
  func.func @transform_8(%arg0: i32) -> (i32, i32) {
    %c0_i32 = arith.constant 0 : i32
    %c0_i32_0 = arith.constant 0 : i32
    %c0_i32_1 = arith.constant 0 : i32
    return %c0_i32, %c0_i32_0 : i32, i32
  }
}

</mosaic_0001>

<llo_original>
// kernel: tpu_custom_call.1
$region0: #{tpu_custom_call.1}
  #allocation0 [shape = 'u32[]', space=smem, size = 0x4, offset = 0x4, fixed_abs, tag = 'smem constant byte address 0x4 - core index']
  #allocation1 [shape = 'u32[144,128]{1,0:T(1,128)}', space=vmem, size = 0x12000, scoped, tag = 'internal scratch']
  #allocation2 [shape = 'f32[64,128]{1,0:T(8,128)}', space=vmem, size = 0x8000, scoped, tag = 'scratch operand']
  #allocation3 [shape = 'f32[8,32]{1,0:T(8,128)}', space=vmem, size = 0x1000, scoped, tag = 'scratch operand']
  #allocation4 [shape = 'f32[8,32]{1,0:T(8,128)}', space=vmem, size = 0x1000, scoped, tag = 'scratch operand']
  %s0 = inlined_call_operand.vmem [shape: bf16[64,32], index: 0, kind: input, shape index: {}]
  %s1 = inlined_call_operand.vmem [shape: bf16[32,128], index: 1, kind: input, shape index: {}]
  %s2 = inlined_call_operand.vmem [shape: bf16[32,128], index: 2, kind: input, shape index: {}]
  %s3 = inlined_call_operand.vmem [shape: f32[1,128], index: 3, kind: input, shape index: {}]
  %s4 = inlined_call_operand.vmem [shape: f32[8,32], index: 4, kind: input, shape index: {}]
  %s5 = inlined_call_operand.vmem [shape: f32[8,32], index: 5, kind: input, shape index: {}]
  %s6 = inlined_call_operand.hbm [shape: f32[8,8,32], index: 6, kind: output, shape index: {0}]
  %s7 = inlined_call_operand.hbm [shape: f32[8,32], index: 7, kind: output, shape index: {1}]
  %s8 = inlined_call_operand.hbm [shape: f32[8,32], index: 8, kind: output, shape index: {2}]
  %9 = xla_tuple %s6, %s7, %s8
  %s10 = sld [smem:[#allocation0]]
  $region50: #{tpu_custom_call.1} parent=0
    _
  %s12 = ssub.s32 1, %s10
  %s13 = scalar_select 0, %s12, %s10
  $region1: #{tpu_custom_call.1} parent=0
    #allocation5 [shape = 'u8[32768]{0}', space=vmem, size = 0x8000, scoped, tag = 'output window, operand 0, single buffered']
    #allocation6 [shape = 's32[1]{0}', space=sflag, size = 0x4, scoped, tag = 'scoped memory for tpu_custom_call.1']
    #allocation7 [shape = 'u8[4096]{0}', space=vmem, size = 0x1000, scoped, tag = 'output window, operand 1, single buffered']
    #allocation8 [shape = 's32[1]{0}', space=sflag, size = 0x4, scoped, tag = 'scoped memory for tpu_custom_call.1']
    #allocation9 [shape = 'u8[4096]{0}', space=vmem, size = 0x1000, scoped, tag = 'output window, operand 2, single buffered']
    %14 = vsyncpa [#allocation6], 0
    %15 = vsyncpa [#allocation8], 0
    // Predicated region
    $region2: #{tpu_custom_call.1} parent=1 // pred_check
      _
    $region3: #{tpu_custom_call.1} parent=1 // pred_check_branch
      %17 = sbr.rel (0) target = $region5
    $region4: #{tpu_custom_call.1} parent=1 // pred_region
      _
    $region5: #{tpu_custom_call.1} parent=1 // pred_fallthru
      _
    // Predicated region
    $region6: #{tpu_custom_call.1} parent=1 // pred_check
      _
    $region7: #{tpu_custom_call.1} parent=1 // pred_check_branch
      %19 = sbr.rel (0) target = $region9
    $region8: #{tpu_custom_call.1} parent=1 // pred_region
      _
    $region9: #{tpu_custom_call.1} parent=1 // pred_fallthru
      _
    // Predicated region
    $region10: #{tpu_custom_call.1} parent=1 // pred_check
      _
    $region11: #{tpu_custom_call.1} parent=1 // pred_check_branch
      %21 = sbr.rel (0) target = $region13
    $region12: #{tpu_custom_call.1} parent=1 // pred_region
      _
    $region13: #{tpu_custom_call.1} parent=1 // pred_fallthru
      _
    // Predicated region
    $region14: #{tpu_custom_call.1} parent=1 // pred_check
      _
    $region15: #{tpu_custom_call.1} parent=1 // pred_check_branch
      %23 = sbr.rel (0) target = $region17
    $region16: #{tpu_custom_call.1} parent=1 // pred_region
      _
    $region17: #{tpu_custom_call.1} parent=1 // pred_fallthru
      _
    // Predicated region
    $region18: #{tpu_custom_call.1} parent=1 // pred_check
      _
    $region19: #{tpu_custom_call.1} parent=1 // pred_check_branch
      %25 = sbr.rel (0) target = $region21
    $region20: #{tpu_custom_call.1} parent=1 // pred_region
      _
    $region21: #{tpu_custom_call.1} parent=1 // pred_fallthru
      _
    // Predicated region
    $region22: #{tpu_custom_call.1} parent=1 // pred_check
      _
    $region23: #{tpu_custom_call.1} parent=1 // pred_check_branch
      %27 = sbr.rel (0) target = $region25
    $region24: #{tpu_custom_call.1} parent=1 // pred_region
      _
    $region25: #{tpu_custom_call.1} parent=1 // pred_fallthru
      _
    %v29 = vld [vmem:[%s0] sm:$0xf]
    %v30 = vld [vmem:[%s0 + $0x4] sm:$0xf]
    %v31 = vld [vmem:[%s0 + $0x8] sm:$0xf]
    %v32 = vld [vmem:[%s0 + $0xc] sm:$0xf]
    %v33 = vld [vmem:[%s0 + $0x10] sm:$0xf]
    %v34 = vld [vmem:[%s0 + $0x14] sm:$0xf]
    %v35 = vld [vmem:[%s0 + $0x18] sm:$0xf]
    %v36 = vld [vmem:[%s0 + $0x1c] sm:$0xf]
    %v37 = vld [vmem:[%s1] sm:$0xf]
    %v38 = vld [vmem:[%s1 + $0x4] sm:$0xf]
    %v39 = vld [vmem:[%s1 + $0x8] sm:$0xf]
    %v40 = vld [vmem:[%s1 + $0xc] sm:$0xf]
    %v41 = vld [vmem:[%s3] sm:$0x1]
    %v43 = vlaneseq
    %v44 = vshrl.u32 %v43, 7
    %v45 = vsub.s32 0, %v44
    %v46 = vrot.slane %v41, %v45
    %v56 = vunpack.c.l.b16 %v29
    %v57 = vunpack.c.l.b16 %v30
    %v58 = vunpack.c.l.b16 %v31
    %v59 = vunpack.c.l.b16 %v32
    %v60 = vunpack.c.l.b16 %v33
    %v61 = vunpack.c.l.b16 %v34
    %v62 = vunpack.c.l.b16 %v35
    %v63 = vunpack.c.l.b16 %v36
    %v64 = vpack.c.b16 %v57, %v56
    %v65 = vpack.c.b16 %v59, %v58
    %v66 = vpack.c.b16 %v61, %v60
    %v67 = vpack.c.b16 %v63, %v62
    %v72 = vunpack.c.l.b16 %v37
    %v73 = vunpack.c.l.b16 %v38
    %v74 = vunpack.c.l.b16 %v39
    %v75 = vunpack.c.l.b16 %v40
    %v76 = vpack.c.b16 %v73, %v72
    %v77 = vpack.c.b16 %v75, %v74
    %vm80 = vcmask 261120
    %v82 = vsel %vm80, %v64, 0
    %v85 = vsel %vm80, %v65, 0
    %v88 = vsel %vm80, %v66, 0
    %v91 = vsel %vm80, %v67, 0
    %93 = vmatprep.subr.bf16.mxu0 0
    %94 = vmatpush1.bf16.msra.mxu0 %v76
    %95 = vmatprep.subr.bf16.mxu0 0
    %96 = vmatpush1.bf16.msra.mxu0 %v77
    %97 = vmatprep.subr.bf16.mxu0 0
    %98 = vmatpush1.bf16.msra.mxu0 0
    %99 = vmatprep.subr.bf16.mxu0 0
    %100 = vmatpush1.bf16.msra.mxu0 0
    %101 = vmatprep.subr.bf16.mxu0 0
    %102 = vmatpush1.bf16.msra.mxu0 0
    %103 = vmatprep.subr.bf16.mxu0 0
    %104 = vmatpush1.bf16.msra.mxu0 0
    %105 = vmatprep.subr.bf16.mxu0 0
    %106 = vmatpush1.bf16.msra.mxu0 0
    %107 = vmatprep.subr.bf16.mxu0 0
    %108 = vmatpush1.bf16.msra.mxu0 0
    %109 = vmatprep.subr.bf16.mxu0 0
    %110 = vmatpush1.bf16.msra.mxu0 0
    %111 = vmatprep.subr.bf16.mxu0 0
    %112 = vmatpush1.bf16.msra.mxu0 0
    %113 = vmatprep.subr.bf16.mxu0 0
    %114 = vmatpush1.bf16.msra.mxu0 0
    %115 = vmatprep.subr.bf16.mxu0 0
    %116 = vmatpush1.bf16.msra.mxu0 0
    %117 = vmatprep.subr.bf16.mxu0 0
    %118 = vmatpush1.bf16.msra.mxu0 0
    %119 = vmatprep.subr.bf16.mxu0 0
    %120 = vmatpush1.bf16.msra.mxu0 0
    %121 = vmatprep.subr.bf16.mxu0 0
    %122 = vmatpush1.bf16.msra.mxu0 0
    %123 = vmatprep.subr.bf16.mxu0 0
    %124 = vmatpush1.bf16.msra.mxu0 0
    %125 = vmatprep.mubr.bf16.mxu0 0
    %126 = vmatmul.mubr.bf16.gmra.mrb[0].mxu0 %v82
    %v127 = vpop.f32.mrb[0].mxu0
    %v128 = vadd.f32 %v46, %v127
    %v129 = vpop.f32.mrb[0].mxu0
    %v130 = vpop.f32.mrb[0].mxu0
    %v131 = vadd.f32 %v46, %v130
    %v132 = vpop.f32.mrb[0].mxu0
    %133 = vmatprep.mubr.bf16.mxu0 0
    %134 = vmatmul.mubr.bf16.gmra.mrb[0].mxu0 %v85
    %v135 = vpop.f32.mrb[0].mxu0
    %v136 = vadd.f32 %v46, %v135
    %v137 = vpop.f32.mrb[0].mxu0
    %v138 = vpop.f32.mrb[0].mxu0
    %v139 = vadd.f32 %v46, %v138
    %v140 = vpop.f32.mrb[0].mxu0
    %141 = vmatprep.mubr.bf16.mxu0 0
    %142 = vmatmul.mubr.bf16.gmra.mrb[0].mxu0 %v88
    %v143 = vpop.f32.mrb[0].mxu0
    %v144 = vadd.f32 %v46, %v143
    %v145 = vpop.f32.mrb[0].mxu0
    %v146 = vpop.f32.mrb[0].mxu0
    %v147 = vadd.f32 %v46, %v146
    %v148 = vpop.f32.mrb[0].mxu0
    %149 = vmatprep.mubr.bf16.mxu0 0
    %150 = vmatmul.mubr.bf16.gmra.mrb[0].mxu0 %v91
    %v151 = vpop.f32.mrb[0].mxu0
    %v152 = vadd.f32 %v46, %v151
    %v153 = vpop.f32.mrb[0].mxu0
    %v154 = vpop.f32.mrb[0].mxu0
    %v155 = vadd.f32 %v46, %v154
    %v156 = vpop.f32.mrb[0].mxu0
    %157 = vdwg.mxu0
    %158 = vst [vmem:[#allocation2] sm:$0xff] %v128
    %159 = vst [vmem:[#allocation2 + $0x8] sm:$0xff] %v131
    %160 = vst [vmem:[#allocation2 + $0x10] sm:$0xff] %v136
    %161 = vst [vmem:[#allocation2 + $0x18] sm:$0xff] %v139
    %162 = vst [vmem:[#allocation2 + $0x20] sm:$0xff] %v144
    %163 = vst [vmem:[#allocation2 + $0x28] sm:$0xff] %v147
    %164 = vst [vmem:[#allocation2 + $0x30] sm:$0xff] %v152
    %165 = vst [vmem:[#allocation2 + $0x38] sm:$0xff] %v155
    %v166 = vld [vmem:[%s4] sm:$0xff]
    %167 = vst.msk [vmem:[#allocation3] sm:$0xff] %vm80, %v166
    %v168 = vld [vmem:[%s5] sm:$0xff]
    %169 = vst.msk [vmem:[#allocation4] sm:$0xff] %vm80, %v168
    %v170 = vlaneseq
    %v171 = vand.u32 %v170, 127
    %vm172 = vcmp.ge.s32.totalorder %v171, 64
    %vm173 = vcmp.lt.s32.totalorder %v171, 96
    %vm174 = vmand %vm172, %vm173
    %v175 = vld [vmem:[#allocation3] sm:$0xff]
    %v176 = vld [vmem:[#allocation4] sm:$0xff]
    %v177 = vld [vmem:[#allocation2] sm:$0xff]
    %v178 = vpack.c.bf16 %v175, %v175
    %v179 = vld [vmem:[%s2] sm:$0xf]
    %v180 = vld [vmem:[%s2 + $0x4] sm:$0xf]
    %v181 = vld [vmem:[%s2 + $0x8] sm:$0xf]
    %v182 = vld [vmem:[%s2 + $0xc] sm:$0xf]
    %v187 = vunpack.c.l.b16 %v179
    %v188 = vunpack.c.l.b16 %v180
    %v189 = vunpack.c.l.b16 %v181
    %v190 = vunpack.c.l.b16 %v182
    %v191 = vpack.c.b16 %v188, %v187
    %v192 = vpack.c.b16 %v190, %v189
    %v196 = vsel %vm80, %v178, 0
    %198 = vmatprep.subr.bf16.mxu0 0
    %199 = vmatpush1.bf16.msra.mxu0 %v191
    %200 = vmatprep.subr.bf16.mxu0 0
    %201 = vmatpush1.bf16.msra.mxu0 %v192
    %202 = vmatprep.subr.bf16.mxu0 0
    %203 = vmatpush1.bf16.msra.mxu0 0
    %204 = vmatprep.subr.bf16.mxu0 0
    %205 = vmatpush1.bf16.msra.mxu0 0
    %206 = vmatprep.subr.bf16.mxu0 0
    %207 = vmatpush1.bf16.msra.mxu0 0
    %208 = vmatprep.subr.bf16.mxu0 0
    %209 = vmatpush1.bf16.msra.mxu0 0
    %210 = vmatprep.subr.bf16.mxu0 0
    %211 = vmatpush1.bf16.msra.mxu0 0
    %212 = vmatprep.subr.bf16.mxu0 0
    %213 = vmatpush1.bf16.msra.mxu0 0
    %214 = vmatprep.subr.bf16.mxu0 0
    %215 = vmatpush1.bf16.msra.mxu0 0
    %216 = vmatprep.subr.bf16.mxu0 0
    %217 = vmatpush1.bf16.msra.mxu0 0
    %218 = vmatprep.subr.bf16.mxu0 0
    %219 = vmatpush1.bf16.msra.mxu0 0
    %220 = vmatprep.subr.bf16.mxu0 0
    %221 = vmatpush1.bf16.msra.mxu0 0
    %222 = vmatprep.subr.bf16.mxu0 0
    %223 = vmatpush1.bf16.msra.mxu0 0
    %224 = vmatprep.subr.bf16.mxu0 0
    %225 = vmatpush1.bf16.msra.mxu0 0
    %226 = vmatprep.subr.bf16.mxu0 0
    %227 = vmatpush1.bf16.msra.mxu0 0
    %228 = vmatprep.subr.bf16.mxu0 0
    %229 = vmatpush1.bf16.msra.mxu0 0
    %230 = vmatprep.mubr.bf16.mxu0 0
    %231 = vmatmul.mubr.bf16.gmra.mrb[0].mxu0 %v196
    %v232 = vpop.f32.mrb[0].mxu0
    %v233 = vadd.f32 0.0, %v232
    %v234 = vpop.f32.mrb[0].mxu0
    %v235 = vpop.f32.mrb[0].mxu0
    %v236 = vpop.f32.mrb[0].mxu0
    %237 = vdwg.mxu0
    %v238 = vadd.f32 %v177, %v233
    %v239 = vtanh.pop %v238
    %v240 = vxor.u32 %v238, 2147483648
    %v241 = vmul.f32 %v240, 1.442695
    %v242 = vpow.pop %v241
    %v243 = vadd.f32 %v242, 1.0
    %v244 = vrcp.pop %v243
    %v245 = vmul.f32 1.0, %v244
    %v246 = vsel %vm174, %v239, %v245
    %248 = vrot.lane.b32.xlu0 %v176, 32
    %v249 = vpop.permute.xlu0 %248
    %v251 = vmul.f32 %v246, %v249
    %253 = vrot.lane.b32.xlu0 %v246, 64
    %v254 = vpop.permute.xlu0 %253
    %v256 = vmul.f32 %v246, %v254
    %258 = vrot.lane.b32.xlu0 %v256, 32
    %v259 = vpop.permute.xlu0 %258
    %v261 = vadd.f32 %v251, %v259
    %v262 = vtanh.pop %v261
    %264 = vrot.lane.b32.xlu0 %v262, 64
    %v265 = vpop.permute.xlu0 %264
    %v267 = vmul.f32 %v246, %v265
    %269 = vrot.lane.b32.xlu0 %v261, 96
    %v270 = vpop.permute.xlu0 %269
    %272 = vst.msk [vmem:[#allocation4] sm:$0xff] %vm80, %v270
    %274 = vrot.lane.b32.xlu0 %v267, 32
    %v275 = vpop.permute.xlu0 %274
    %277 = vst.msk [vmem:[#allocation3] sm:$0xff] %vm80, %v275
    %278 = vst.msk [vmem:[#allocation5] sm:$0xff] %vm80, %v275
    %v279 = vld [vmem:[#allocation3] sm:$0xff]
    %v280 = vld [vmem:[#allocation4] sm:$0xff]
    %s281 = scalar_lea.vmem [#allocation2], 8
    %v282 = vld [vmem:[%s281] sm:$0xff]
    %v283 = vpack.c.bf16 %v279, %v279
    %v284 = vld [vmem:[%s2] sm:$0xf]
    %v285 = vld [vmem:[%s2 + $0x4] sm:$0xf]
    %v286 = vld [vmem:[%s2 + $0x8] sm:$0xf]
    %v287 = vld [vmem:[%s2 + $0xc] sm:$0xf]
    %v292 = vunpack.c.l.b16 %v284
    %v293 = vunpack.c.l.b16 %v285
    %v294 = vunpack.c.l.b16 %v286
    %v295 = vunpack.c.l.b16 %v287
    %v296 = vpack.c.b16 %v293, %v292
    %v297 = vpack.c.b16 %v295, %v294
    %v301 = vsel %vm80, %v283, 0
    %303 = vmatprep.subr.bf16.mxu0 0
    %304 = vmatpush1.bf16.msra.mxu0 %v296
    %305 = vmatprep.subr.bf16.mxu0 0
    %306 = vmatpush1.bf16.msra.mxu0 %v297
    %307 = vmatprep.subr.bf16.mxu0 0
    %308 = vmatpush1.bf16.msra.mxu0 0
    %309 = vmatprep.subr.bf16.mxu0 0
    %310 = vmatpush1.bf16.msra.mxu0 0
    %311 = vmatprep.subr.bf16.mxu0 0
    %312 = vmatpush1.bf16.msra.mxu0 0
    %313 = vmatprep.subr.bf16.mxu0 0
    %314 = vmatpush1.bf16.msra.mxu0 0
    %315 = vmatprep.subr.bf16.mxu0 0
    %316 = vmatpush1.bf16.msra.mxu0 0
    %317 = vmatprep.subr.bf16.mxu0 0
    %318 = vmatpush1.bf16.msra.mxu0 0
    %319 = vmatprep.subr.bf16.mxu0 0
    %320 = vmatpush1.bf16.msra.mxu0 0
    %321 = vmatprep.subr.bf16.mxu0 0
    %322 = vmatpush1.bf16.msra.mxu0 0
    %323 = vmatprep.subr.bf16.mxu0 0
    %324 = vmatpush1.bf16.msra.mxu0 0
    %325 = vmatprep.subr.bf16.mxu0 0
    %326 = vmatpush1.bf16.msra.mxu0 0
    %327 = vmatprep.subr.bf16.mxu0 0
    %328 = vmatpush1.bf16.msra.mxu0 0
    %329 = vmatprep.subr.bf16.mxu0 0
    %330 = vmatpush1.bf16.msra.mxu0 0
    %331 = vmatprep.subr.bf16.mxu0 0
    %332 = vmatpush1.bf16.msra.mxu0 0
    %333 = vmatprep.subr.bf16.mxu0 0
    %334 = vmatpush1.bf16.msra.mxu0 0
    %335 = vmatprep.mubr.bf16.mxu0 0
    %336 = vmatmul.mubr.bf16.gmra.mrb[0].mxu0 %v301
    %v337 = vpop.f32.mrb[0].mxu0
    %v338 = vadd.f32 0.0, %v337
    %v339 = vpop.f32.mrb[0].mxu0
    %v340 = vpop.f32.mrb[0].mxu0
    %v341 = vpop.f32.mrb[0].mxu0
    %342 = vdwg.mxu0
    %v343 = vadd.f32 %v282, %v338
    %v344 = vtanh.pop %v343
    %v345 = vxor.u32 %v343, 2147483648
    %v346 = vmul.f32 %v345, 1.442695
    %v347 = vpow.pop %v346
    %v348 = vadd.f32 %v347, 1.0
    %v349 = vrcp.pop %v348
    %v350 = vmul.f32 1.0, %v349
    %v351 = vsel %vm174, %v344, %v350
    %353 = vrot.lane.b32.xlu0 %v280, 32
    %v354 = vpop.permute.xlu0 %353
    %v356 = vmul.f32 %v351, %v354
    %358 = vrot.lane.b32.xlu0 %v351, 64
    %v359 = vpop.permute.xlu0 %358
    %v361 = vmul.f32 %v351, %v359
    %363 = vrot.lane.b32.xlu0 %v361, 32
    %v364 = vpop.permute.xlu0 %363
    %v366 = vadd.f32 %v356, %v364
    %v367 = vtanh.pop %v366
    %369 = vrot.lane.b32.xlu0 %v367, 64
    %v370 = vpop.permute.xlu0 %369
    %v372 = vmul.f32 %v351, %v370
    %374 = vrot.lane.b32.xlu0 %v366, 96
    %v375 = vpop.permute.xlu0 %374
    %377 = vst.msk [vmem:[#allocation4] sm:$0xff] %vm80, %v375
    %379 = vrot.lane.b32.xlu0 %v372, 32
    %v380 = vpop.permute.xlu0 %379
    %382 = vst.msk [vmem:[#allocation3] sm:$0xff] %vm80, %v380
    %s383 = scalar_lea.vmem [#allocation5], 8
    %384 = vst.msk [vmem:[%s383] sm:$0xff] %vm80, %v380
    %v385 = vld [vmem:[#allocation3] sm:$0xff]
    %v386 = vld [vmem:[#allocation4] sm:$0xff]
    %s387 = scalar_lea.vmem [#allocation2], 16
    %v388 = vld [vmem:[%s387] sm:$0xff]
    %v389 = vpack.c.bf16 %v385, %v385
    %v390 = vld [vmem:[%s2] sm:$0xf]
    %v391 = vld [vmem:[%s2 + $0x4] sm:$0xf]
    %v392 = vld [vmem:[%s2 + $0x8] sm:$0xf]
    %v393 = vld [vmem:[%s2 + $0xc] sm:$0xf]
    %v398 = vunpack.c.l.b16 %v390
    %v399 = vunpack.c.l.b16 %v391
    %v400 = vunpack.c.l.b16 %v392
    %v401 = vunpack.c.l.b16 %v393
    %v402 = vpack.c.b16 %v399, %v398
    %v403 = vpack.c.b16 %v401, %v400
    %v407 = vsel %vm80, %v389, 0
    %409 = vmatprep.subr.bf16.mxu0 0
    %410 = vmatpush1.bf16.msra.mxu0 %v402
    %411 = vmatprep.subr.bf16.mxu0 0
    %412 = vmatpush1.bf16.msra.mxu0 %v403
    %413 = vmatprep.subr.bf16.mxu0 0
    %414 = vmatpush1.bf16.msra.mxu0 0
    %415 = vmatprep.subr.bf16.mxu0 0
    %416 = vmatpush1.bf16.msra.mxu0 0
    %417 = vmatprep.subr.bf16.mxu0 0
    %418 = vmatpush1.bf16.msra.mxu0 0
    %419 = vmatprep.subr.bf16.mxu0 0
    %420 = vmatpush1.bf16.msra.mxu0 0
    %421 = vmatprep.subr.bf16.mxu0 0
    %422 = vmatpush1.bf16.msra.mxu0 0
    %423 = vmatprep.subr.bf16.mxu0 0
    %424 = vmatpush1.bf16.msra.mxu0 0
    %425 = vmatprep.subr.bf16.mxu0 0
    %426 = vmatpush1.bf16.msra.mxu0 0
    %427 = vmatprep.subr.bf16.mxu0 0
    %428 = vmatpush1.bf16.msra.mxu0 0
    %429 = vmatprep.subr.bf16.mxu0 0
    %430 = vmatpush1.bf16.msra.mxu0 0
    %431 = vmatprep.subr.bf16.mxu0 0
    %432 = vmatpush1.bf16.msra.mxu0 0
    %433 = vmatprep.subr.bf16.mxu0 0
    %434 = vmatpush1.bf16.msra.mxu0 0
    %435 = vmatprep.subr.bf16.mxu0 0
    %436 = vmatpush1.bf16.msra.mxu0 0
    %437 = vmatprep.subr.bf16.mxu0 0
    %438 = vmatpush1.bf16.msra.mxu0 0
    %439 = vmatprep.subr.bf16.mxu0 0
    %440 = vmatpush1.bf16.msra.mxu0 0
    %441 = vmatprep.mubr.bf16.mxu0 0
    %442 = vmatmul.mubr.bf16.gmra.mrb[0].mxu0 %v407
    %v443 = vpop.f32.mrb[0].mxu0
    %v444 = vadd.f32 0.0, %v443
    %v445 = vpop.f32.mrb[0].mxu0
    %v446 = vpop.f32.mrb[0].mxu0
    %v447 = vpop.f32.mrb[0].mxu0
    %448 = vdwg.mxu0
    %v449 = vadd.f32 %v388, %v444
    %v450 = vtanh.pop %v449
    %v451 = vxor.u32 %v449, 2147483648
    %v452 = vmul.f32 %v451, 1.442695
    %v453 = vpow.pop %v452
    %v454 = vadd.f32 %v453, 1.0
    %v455 = vrcp.pop %v454
    %v456 = vmul.f32 1.0, %v455
    %v457 = vsel %vm174, %v450, %v456
    %459 = vrot.lane.b32.xlu0 %v386, 32
    %v460 = vpop.permute.xlu0 %459
    %v462 = vmul.f32 %v457, %v460
    %464 = vrot.lane.b32.xlu0 %v457, 64
    %v465 = vpop.permute.xlu0 %464
    %v467 = vmul.f32 %v457, %v465
    %469 = vrot.lane.b32.xlu0 %v467, 32
    %v470 = vpop.permute.xlu0 %469
    %v472 = vadd.f32 %v462, %v470
    %v473 = vtanh.pop %v472
    %475 = vrot.lane.b32.xlu0 %v473, 64
    %v476 = vpop.permute.xlu0 %475
    %v478 = vmul.f32 %v457, %v476
    %480 = vrot.lane.b32.xlu0 %v472, 96
    %v481 = vpop.permute.xlu0 %480
    %483 = vst.msk [vmem:[#allocation4] sm:$0xff] %vm80, %v481
    %485 = vrot.lane.b32.xlu0 %v478, 32
    %v486 = vpop.permute.xlu0 %485
    %488 = vst.msk [vmem:[#allocation3] sm:$0xff] %vm80, %v486
    %s489 = scalar_lea.vmem [#allocation5], 16
    %490 = vst.msk [vmem:[%s489] sm:$0xff] %vm80, %v486
    %v491 = vld [vmem:[#allocation3] sm:$0xff]
    %v492 = vld [vmem:[#allocation4] sm:$0xff]
    %s493 = scalar_lea.vmem [#allocation2], 24
    %v494 = vld [vmem:[%s493] sm:$0xff]
    %v495 = vpack.c.bf16 %v491, %v491
    %v496 = vld [vmem:[%s2] sm:$0xf]
    %v497 = vld [vmem:[%s2 + $0x4] sm:$0xf]
    %v498 = vld [vmem:[%s2 + $0x8] sm:$0xf]
    %v499 = vld [vmem:[%s2 + $0xc] sm:$0xf]
    %v504 = vunpack.c.l.b16 %v496
    %v505 = vunpack.c.l.b16 %v497
    %v506 = vunpack.c.l.b16 %v498
    %v507 = vunpack.c.l.b16 %v499
    %v508 = vpack.c.b16 %v505, %v504
    %v509 = vpack.c.b16 %v507, %v506
    %v513 = vsel %vm80, %v495, 0
    %515 = vmatprep.subr.bf16.mxu0 0
    %516 = vmatpush1.bf16.msra.mxu0 %v508
    %517 = vmatprep.subr.bf16.mxu0 0
    %518 = vmatpush1.bf16.msra.mxu0 %v509
    %519 = vmatprep.subr.bf16.mxu0 0
    %520 = vmatpush1.bf16.msra.mxu0 0
    %521 = vmatprep.subr.bf16.mxu0 0
    %522 = vmatpush1.bf16.msra.mxu0 0
    %523 = vmatprep.subr.bf16.mxu0 0
    %524 = vmatpush1.bf16.msra.mxu0 0
    %525 = vmatprep.subr.bf16.mxu0 0
    %526 = vmatpush1.bf16.msra.mxu0 0
    %527 = vmatprep.subr.bf16.mxu0 0
    %528 = vmatpush1.bf16.msra.mxu0 0
    %529 = vmatprep.subr.bf16.mxu0 0
    %530 = vmatpush1.bf16.msra.mxu0 0
    %531 = vmatprep.subr.bf16.mxu0 0
    %532 = vmatpush1.bf16.msra.mxu0 0
    %533 = vmatprep.subr.bf16.mxu0 0
    %534 = vmatpush1.bf16.msra.mxu0 0
    %535 = vmatprep.subr.bf16.mxu0 0
    %536 = vmatpush1.bf16.msra.mxu0 0
    %537 = vmatprep.subr.bf16.mxu0 0
    %538 = vmatpush1.bf16.msra.mxu0 0
    %539 = vmatprep.subr.bf16.mxu0 0
    %540 = vmatpush1.bf16.msra.mxu0 0
    %541 = vmatprep.subr.bf16.mxu0 0
    %542 = vmatpush1.bf16.msra.mxu0 0
    %543 = vmatprep.subr.bf16.mxu0 0
    %544 = vmatpush1.bf16.msra.mxu0 0
    %545 = vmatprep.subr.bf16.mxu0 0
    %546 = vmatpush1.bf16.msra.mxu0 0
    %547 = vmatprep.mubr.bf16.mxu0 0
    %548 = vmatmul.mubr.bf16.gmra.mrb[0].mxu0 %v513
    %v549 = vpop.f32.mrb[0].mxu0
    %v550 = vadd.f32 0.0, %v549
    %v551 = vpop.f32.mrb[0].mxu0
    %v552 = vpop.f32.mrb[0].mxu0
    %v553 = vpop.f32.mrb[0].mxu0
    %554 = vdwg.mxu0
    %v555 = vadd.f32 %v494, %v550
    %v556 = vtanh.pop %v555
    %v557 = vxor.u32 %v555, 2147483648
    %v558 = vmul.f32 %v557, 1.442695
    %v559 = vpow.pop %v558
    %v560 = vadd.f32 %v559, 1.0
    %v561 = vrcp.pop %v560
    %v562 = vmul.f32 1.0, %v561
    %v563 = vsel %vm174, %v556, %v562
    %565 = vrot.lane.b32.xlu0 %v492, 32
    %v566 = vpop.permute.xlu0 %565
    %v568 = vmul.f32 %v563, %v566
    %570 = vrot.lane.b32.xlu0 %v563, 64
    %v571 = vpop.permute.xlu0 %570
    %v573 = vmul.f32 %v563, %v571
    %575 = vrot.lane.b32.xlu0 %v573, 32
    %v576 = vpop.permute.xlu0 %575
    %v578 = vadd.f32 %v568, %v576
    %v579 = vtanh.pop %v578
    %581 = vrot.lane.b32.xlu0 %v579, 64
    %v582 = vpop.permute.xlu0 %581
    %v584 = vmul.f32 %v563, %v582
    %586 = vrot.lane.b32.xlu0 %v578, 96
    %v587 = vpop.permute.xlu0 %586
    %589 = vst.msk [vmem:[#allocation4] sm:$0xff] %vm80, %v587
    %591 = vrot.lane.b32.xlu0 %v584, 32
    %v592 = vpop.permute.xlu0 %591
    %594 = vst.msk [vmem:[#allocation3] sm:$0xff] %vm80, %v592
    %s595 = scalar_lea.vmem [#allocation5], 24
    %596 = vst.msk [vmem:[%s595] sm:$0xff] %vm80, %v592
    %v597 = vld [vmem:[#allocation3] sm:$0xff]
    %v598 = vld [vmem:[#allocation4] sm:$0xff]
    %s599 = scalar_lea.vmem [#allocation2], 32
    %v600 = vld [vmem:[%s599] sm:$0xff]
    %v601 = vpack.c.bf16 %v597, %v597
    %v602 = vld [vmem:[%s2] sm:$0xf]
    %v603 = vld [vmem:[%s2 + $0x4] sm:$0xf]
    %v604 = vld [vmem:[%s2 + $0x8] sm:$0xf]
    %v605 = vld [vmem:[%s2 + $0xc] sm:$0xf]
    %v610 = vunpack.c.l.b16 %v602
    %v611 = vunpack.c.l.b16 %v603
    %v612 = vunpack.c.l.b16 %v604
    %v613 = vunpack.c.l.b16 %v605
    %v614 = vpack.c.b16 %v611, %v610
    %v615 = vpack.c.b16 %v613, %v612
    %v619 = vsel %vm80, %v601, 0
    %621 = vmatprep.subr.bf16.mxu0 0
    %622 = vmatpush1.bf16.msra.mxu0 %v614
    %623 = vmatprep.subr.bf16.mxu0 0
    %624 = vmatpush1.bf16.msra.mxu0 %v615
    %625 = vmatprep.subr.bf16.mxu0 0
    %626 = vmatpush1.bf16.msra.mxu0 0
    %627 = vmatprep.subr.bf16.mxu0 0
    %628 = vmatpush1.bf16.msra.mxu0 0
    %629 = vmatprep.subr.bf16.mxu0 0
    %630 = vmatpush1.bf16.msra.mxu0 0
    %631 = vmatprep.subr.bf16.mxu0 0
    %632 = vmatpush1.bf16.msra.mxu0 0
    %633 = vmatprep.subr.bf16.mxu0 0
    %634 = vmatpush1.bf16.msra.mxu0 0
    %635 = vmatprep.subr.bf16.mxu0 0
    %636 = vmatpush1.bf16.msra.mxu0 0
    %637 = vmatprep.subr.bf16.mxu0 0
    %638 = vmatpush1.bf16.msra.mxu0 0
    %639 = vmatprep.subr.bf16.mxu0 0
    %640 = vmatpush1.bf16.msra.mxu0 0
    %641 = vmatprep.subr.bf16.mxu0 0
    %642 = vmatpush1.bf16.msra.mxu0 0
    %643 = vmatprep.subr.bf16.mxu0 0
    %644 = vmatpush1.bf16.msra.mxu0 0
    %645 = vmatprep.subr.bf16.mxu0 0
    %646 = vmatpush1.bf16.msra.mxu0 0
    %647 = vmatprep.subr.bf16.mxu0 0
    %648 = vmatpush1.bf16.msra.mxu0 0
    %649 = vmatprep.subr.bf16.mxu0 0
    %650 = vmatpush1.bf16.msra.mxu0 0
    %651 = vmatprep.subr.bf16.mxu0 0
    %652 = vmatpush1.bf16.msra.mxu0 0
    %653 = vmatprep.mubr.bf16.mxu0 0
    %654 = vmatmul.mubr.bf16.gmra.mrb[0].mxu0 %v619
    %v655 = vpop.f32.mrb[0].mxu0
    %v656 = vadd.f32 0.0, %v655
    %v657 = vpop.f32.mrb[0].mxu0
    %v658 = vpop.f32.mrb[0].mxu0
    %v659 = vpop.f32.mrb[0].mxu0
    %660 = vdwg.mxu0
    %v661 = vadd.f32 %v600, %v656
    %v662 = vtanh.pop %v661
    %v663 = vxor.u32 %v661, 2147483648
    %v664 = vmul.f32 %v663, 1.442695
    %v665 = vpow.pop %v664
    %v666 = vadd.f32 %v665, 1.0
    %v667 = vrcp.pop %v666
    %v668 = vmul.f32 1.0, %v667
    %v669 = vsel %vm174, %v662, %v668
    %671 = vrot.lane.b32.xlu0 %v598, 32
    %v672 = vpop.permute.xlu0 %671
    %v674 = vmul.f32 %v669, %v672
    %676 = vrot.lane.b32.xlu0 %v669, 64
    %v677 = vpop.permute.xlu0 %676
    %v679 = vmul.f32 %v669, %v677
    %681 = vrot.lane.b32.xlu0 %v679, 32
    %v682 = vpop.permute.xlu0 %681
    %v684 = vadd.f32 %v674, %v682
    %v685 = vtanh.pop %v684
    %687 = vrot.lane.b32.xlu0 %v685, 64
    %v688 = vpop.permute.xlu0 %687
    %v690 = vmul.f32 %v669, %v688
    %692 = vrot.lane.b32.xlu0 %v684, 96
    %v693 = vpop.permute.xlu0 %692
    %695 = vst.msk [vmem:[#allocation4] sm:$0xff] %vm80, %v693
    %697 = vrot.lane.b32.xlu0 %v690, 32
    %v698 = vpop.permute.xlu0 %697
    %700 = vst.msk [vmem:[#allocation3] sm:$0xff] %vm80, %v698
    %s701 = scalar_lea.vmem [#allocation5], 32
    %702 = vst.msk [vmem:[%s701] sm:$0xff] %vm80, %v698
    %v703 = vld [vmem:[#allocation3] sm:$0xff]
    %v704 = vld [vmem:[#allocation4] sm:$0xff]
    %s705 = scalar_lea.vmem [#allocation2], 40
    %v706 = vld [vmem:[%s705] sm:$0xff]
    %v707 = vpack.c.bf16 %v703, %v703
    %v708 = vld [vmem:[%s2] sm:$0xf]
    %v709 = vld [vmem:[%s2 + $0x4] sm:$0xf]
    %v710 = vld [vmem:[%s2 + $0x8] sm:$0xf]
    %v711 = vld [vmem:[%s2 + $0xc] sm:$0xf]
    %v716 = vunpack.c.l.b16 %v708
    %v717 = vunpack.c.l.b16 %v709
    %v718 = vunpack.c.l.b16 %v710
    %v719 = vunpack.c.l.b16 %v711
    %v720 = vpack.c.b16 %v717, %v716
    %v721 = vpack.c.b16 %v719, %v718
    %v725 = vsel %vm80, %v707, 0
    %727 = vmatprep.subr.bf16.mxu0 0
    %728 = vmatpush1.bf16.msra.mxu0 %v720
    %729 = vmatprep.subr.bf16.mxu0 0
    %730 = vmatpush1.bf16.msra.mxu0 %v721
    %731 = vmatprep.subr.bf16.mxu0 0
    %732 = vmatpush1.bf16.msra.mxu0 0
    %733 = vmatprep.subr.bf16.mxu0 0
    %734 = vmatpush1.bf16.msra.mxu0 0
    %735 = vmatprep.subr.bf16.mxu0 0
    %736 = vmatpush1.bf16.msra.mxu0 0
    %737 = vmatprep.subr.bf16.mxu0 0
    %738 = vmatpush1.bf16.msra.mxu0 0
    %739 = vmatprep.subr.bf16.mxu0 0
    %740 = vmatpush1.bf16.msra.mxu0 0
    %741 = vmatprep.subr.bf16.mxu0 0
    %742 = vmatpush1.bf16.msra.mxu0 0
    %743 = vmatprep.subr.bf16.mxu0 0
    %744 = vmatpush1.bf16.msra.mxu0 0
    %745 = vmatprep.subr.bf16.mxu0 0
    %746 = vmatpush1.bf16.msra.mxu0 0
    %747 = vmatprep.subr.bf16.mxu0 0
    %748 = vmatpush1.bf16.msra.mxu0 0
    %749 = vmatprep.subr.bf16.mxu0 0
    %750 = vmatpush1.bf16.msra.mxu0 0
    %751 = vmatprep.subr.bf16.mxu0 0
    %752 = vmatpush1.bf16.msra.mxu0 0
    %753 = vmatprep.subr.bf16.mxu0 0
    %754 = vmatpush1.bf16.msra.mxu0 0
    %755 = vmatprep.subr.bf16.mxu0 0
    %756 = vmatpush1.bf16.msra.mxu0 0
    %757 = vmatprep.subr.bf16.mxu0 0
    %758 = vmatpush1.bf16.msra.mxu0 0
    %759 = vmatprep.mubr.bf16.mxu0 0
    %760 = vmatmul.mubr.bf16.gmra.mrb[0].mxu0 %v725
    %v761 = vpop.f32.mrb[0].mxu0
    %v762 = vadd.f32 0.0, %v761
    %v763 = vpop.f32.mrb[0].mxu0
    %v764 = vpop.f32.mrb[0].mxu0
    %v765 = vpop.f32.mrb[0].mxu0
    %766 = vdwg.mxu0
    %v767 = vadd.f32 %v706, %v762
    %v768 = vtanh.pop %v767
    %v769 = vxor.u32 %v767, 2147483648
    %v770 = vmul.f32 %v769, 1.442695
    %v771 = vpow.pop %v770
    %v772 = vadd.f32 %v771, 1.0
    %v773 = vrcp.pop %v772
    %v774 = vmul.f32 1.0, %v773
    %v775 = vsel %vm174, %v768, %v774
    %777 = vrot.lane.b32.xlu0 %v704, 32
    %v778 = vpop.permute.xlu0 %777
    %v780 = vmul.f32 %v775, %v778
    %782 = vrot.lane.b32.xlu0 %v775, 64
    %v783 = vpop.permute.xlu0 %782
    %v785 = vmul.f32 %v775, %v783
    %787 = vrot.lane.b32.xlu0 %v785, 32
    %v788 = vpop.permute.xlu0 %787
    %v790 = vadd.f32 %v780, %v788
    %v791 = vtanh.pop %v790
    %793 = vrot.lane.b32.xlu0 %v791, 64
    %v794 = vpop.permute.xlu0 %793
    %v796 = vmul.f32 %v775, %v794
    %798 = vrot.lane.b32.xlu0 %v790, 96
    %v799 = vpop.permute.xlu0 %798
    %801 = vst.msk [vmem:[#allocation4] sm:$0xff] %vm80, %v799
    %803 = vrot.lane.b32.xlu0 %v796, 32
    %v804 = vpop.permute.xlu0 %803
    %806 = vst.msk [vmem:[#allocation3] sm:$0xff] %vm80, %v804
    %s807 = scalar_lea.vmem [#allocation5], 40
    %808 = vst.msk [vmem:[%s807] sm:$0xff] %vm80, %v804
    %v809 = vld [vmem:[#allocation3] sm:$0xff]
    %v810 = vld [vmem:[#allocation4] sm:$0xff]
    %s811 = scalar_lea.vmem [#allocation2], 48
    %v812 = vld [vmem:[%s811] sm:$0xff]
    %v813 = vpack.c.bf16 %v809, %v809
    %v814 = vld [vmem:[%s2] sm:$0xf]
    %v815 = vld [vmem:[%s2 + $0x4] sm:$0xf]
    %v816 = vld [vmem:[%s2 + $0x8] sm:$0xf]
    %v817 = vld [vmem:[%s2 + $0xc] sm:$0xf]
    %v822 = vunpack.c.l.b16 %v814
    %v823 = vunpack.c.l.b16 %v815
    %v824 = vunpack.c.l.b16 %v816
    %v825 = vunpack.c.l.b16 %v817
    %v826 = vpack.c.b16 %v823, %v822
    %v827 = vpack.c.b16 %v825, %v824
    %v831 = vsel %vm80, %v813, 0
    %833 = vmatprep.subr.bf16.mxu0 0
    %834 = vmatpush1.bf16.msra.mxu0 %v826
    %835 = vmatprep.subr.bf16.mxu0 0
    %836 = vmatpush1.bf16.msra.mxu0 %v827
    %837 = vmatprep.subr.bf16.mxu0 0
    %838 = vmatpush1.bf16.msra.mxu0 0
    %839 = vmatprep.subr.bf16.mxu0 0
    %840 = vmatpush1.bf16.msra.mxu0 0
    %841 = vmatprep.subr.bf16.mxu0 0
    %842 = vmatpush1.bf16.msra.mxu0 0
    %843 = vmatprep.subr.bf16.mxu0 0
    %844 = vmatpush1.bf16.msra.mxu0 0
    %845 = vmatprep.subr.bf16.mxu0 0
    %846 = vmatpush1.bf16.msra.mxu0 0
    %847 = vmatprep.subr.bf16.mxu0 0
    %848 = vmatpush1.bf16.msra.mxu0 0
    %849 = vmatprep.subr.bf16.mxu0 0
    %850 = vmatpush1.bf16.msra.mxu0 0
    %851 = vmatprep.subr.bf16.mxu0 0
    %852 = vmatpush1.bf16.msra.mxu0 0
    %853 = vmatprep.subr.bf16.mxu0 0
    %854 = vmatpush1.bf16.msra.mxu0 0
    %855 = vmatprep.subr.bf16.mxu0 0
    %856 = vmatpush1.bf16.msra.mxu0 0
    %857 = vmatprep.subr.bf16.mxu0 0
    %858 = vmatpush1.bf16.msra.mxu0 0
    %859 = vmatprep.subr.bf16.mxu0 0
    %860 = vmatpush1.bf16.msra.mxu0 0
    %861 = vmatprep.subr.bf16.mxu0 0
    %862 = vmatpush1.bf16.msra.mxu0 0
    %863 = vmatprep.subr.bf16.mxu0 0
    %864 = vmatpush1.bf16.msra.mxu0 0
    %865 = vmatprep.mubr.bf16.mxu0 0
    %866 = vmatmul.mubr.bf16.gmra.mrb[0].mxu0 %v831
    %v867 = vpop.f32.mrb[0].mxu0
    %v868 = vadd.f32 0.0, %v867
    %v869 = vpop.f32.mrb[0].mxu0
    %v870 = vpop.f32.mrb[0].mxu0
    %v871 = vpop.f32.mrb[0].mxu0
    %872 = vdwg.mxu0
    %v873 = vadd.f32 %v812, %v868
    %v874 = vtanh.pop %v873
    %v875 = vxor.u32 %v873, 2147483648
    %v876 = vmul.f32 %v875, 1.442695
    %v877 = vpow.pop %v876
    %v878 = vadd.f32 %v877, 1.0
    %v879 = vrcp.pop %v878
    %v880 = vmul.f32 1.0, %v879
    %v881 = vsel %vm174, %v874, %v880
    %883 = vrot.lane.b32.xlu0 %v810, 32
    %v884 = vpop.permute.xlu0 %883
    %v886 = vmul.f32 %v881, %v884
    %888 = vrot.lane.b32.xlu0 %v881, 64
    %v889 = vpop.permute.xlu0 %888
    %v891 = vmul.f32 %v881, %v889
    %893 = vrot.lane.b32.xlu0 %v891, 32
    %v894 = vpop.permute.xlu0 %893
    %v896 = vadd.f32 %v886, %v894
    %v897 = vtanh.pop %v896
    %899 = vrot.lane.b32.xlu0 %v897, 64
    %v900 = vpop.permute.xlu0 %899
    %v902 = vmul.f32 %v881, %v900
    %904 = vrot.lane.b32.xlu0 %v896, 96
    %v905 = vpop.permute.xlu0 %904
    %907 = vst.msk [vmem:[#allocation4] sm:$0xff] %vm80, %v905
    %909 = vrot.lane.b32.xlu0 %v902, 32
    %v910 = vpop.permute.xlu0 %909
    %912 = vst.msk [vmem:[#allocation3] sm:$0xff] %vm80, %v910
    %s913 = scalar_lea.vmem [#allocation5], 48
    %914 = vst.msk [vmem:[%s913] sm:$0xff] %vm80, %v910
    %v915 = vld [vmem:[#allocation3] sm:$0xff]
    %v916 = vld [vmem:[#allocation4] sm:$0xff]
    %s917 = scalar_lea.vmem [#allocation2], 56
    %v918 = vld [vmem:[%s917] sm:$0xff]
    %v919 = vpack.c.bf16 %v915, %v915
    %v920 = vld [vmem:[%s2] sm:$0xf]
    %v921 = vld [vmem:[%s2 + $0x4] sm:$0xf]
    %v922 = vld [vmem:[%s2 + $0x8] sm:$0xf]
    %v923 = vld [vmem:[%s2 + $0xc] sm:$0xf]
    %v928 = vunpack.c.l.b16 %v920
    %v929 = vunpack.c.l.b16 %v921
    %v930 = vunpack.c.l.b16 %v922
    %v931 = vunpack.c.l.b16 %v923
    %v932 = vpack.c.b16 %v929, %v928
    %v933 = vpack.c.b16 %v931, %v930
    %v937 = vsel %vm80, %v919, 0
    %939 = vmatprep.subr.bf16.mxu0 0
    %940 = vmatpush1.bf16.msra.mxu0 %v932
    %941 = vmatprep.subr.bf16.mxu0 0
    %942 = vmatpush1.bf16.msra.mxu0 %v933
    %943 = vmatprep.subr.bf16.mxu0 0
    %944 = vmatpush1.bf16.msra.mxu0 0
    %945 = vmatprep.subr.bf16.mxu0 0
    %946 = vmatpush1.bf16.msra.mxu0 0
    %947 = vmatprep.subr.bf16.mxu0 0
    %948 = vmatpush1.bf16.msra.mxu0 0
    %949 = vmatprep.subr.bf16.mxu0 0
    %950 = vmatpush1.bf16.msra.mxu0 0
    %951 = vmatprep.subr.bf16.mxu0 0
    %952 = vmatpush1.bf16.msra.mxu0 0
    %953 = vmatprep.subr.bf16.mxu0 0
    %954 = vmatpush1.bf16.msra.mxu0 0
    %955 = vmatprep.subr.bf16.mxu0 0
    %956 = vmatpush1.bf16.msra.mxu0 0
    %957 = vmatprep.subr.bf16.mxu0 0
    %958 = vmatpush1.bf16.msra.mxu0 0
    %959 = vmatprep.subr.bf16.mxu0 0
    %960 = vmatpush1.bf16.msra.mxu0 0
    %961 = vmatprep.subr.bf16.mxu0 0
    %962 = vmatpush1.bf16.msra.mxu0 0
    %963 = vmatprep.subr.bf16.mxu0 0
    %964 = vmatpush1.bf16.msra.mxu0 0
    %965 = vmatprep.subr.bf16.mxu0 0
    %966 = vmatpush1.bf16.msra.mxu0 0
    %967 = vmatprep.subr.bf16.mxu0 0
    %968 = vmatpush1.bf16.msra.mxu0 0
    %969 = vmatprep.subr.bf16.mxu0 0
    %970 = vmatpush1.bf16.msra.mxu0 0
    %971 = vmatprep.mubr.bf16.mxu0 0
    %972 = vmatmul.mubr.bf16.gmra.mrb[0].mxu0 %v937
    %v973 = vpop.f32.mrb[0].mxu0
    %v974 = vadd.f32 0.0, %v973
    %v975 = vpop.f32.mrb[0].mxu0
    %v976 = vpop.f32.mrb[0].mxu0
    %v977 = vpop.f32.mrb[0].mxu0
    %978 = vdwg.mxu0
    %v979 = vadd.f32 %v918, %v974
    %v980 = vtanh.pop %v979
    %v981 = vxor.u32 %v979, 2147483648
    %v982 = vmul.f32 %v981, 1.442695
    %v983 = vpow.pop %v982
    %v984 = vadd.f32 %v983, 1.0
    %v985 = vrcp.pop %v984
    %v986 = vmul.f32 1.0, %v985
    %v987 = vsel %vm174, %v980, %v986
    %989 = vrot.lane.b32.xlu0 %v916, 32
    %v990 = vpop.permute.xlu0 %989
    %v992 = vmul.f32 %v987, %v990
    %994 = vrot.lane.b32.xlu0 %v987, 64
    %v995 = vpop.permute.xlu0 %994
    %v997 = vmul.f32 %v987, %v995
    %999 = vrot.lane.b32.xlu0 %v997, 32
    %v1000 = vpop.permute.xlu0 %999
    %v1002 = vadd.f32 %v992, %v1000
    %v1003 = vtanh.pop %v1002
    %1005 = vrot.lane.b32.xlu0 %v1003, 64
    %v1006 = vpop.permute.xlu0 %1005
    %v1008 = vmul.f32 %v987, %v1006
    %1010 = vrot.lane.b32.xlu0 %v1002, 96
    %v1011 = vpop.permute.xlu0 %1010
    %1013 = vst.msk [vmem:[#allocation4] sm:$0xff] %vm80, %v1011
    %1015 = vrot.lane.b32.xlu0 %v1008, 32
    %v1016 = vpop.permute.xlu0 %1015
    %1018 = vst.msk [vmem:[#allocation3] sm:$0xff] %vm80, %v1016
    %s1019 = scalar_lea.vmem [#allocation5], 56
    %1020 = vst.msk [vmem:[%s1019] sm:$0xff] %vm80, %v1016
    %v1021 = vld [vmem:[#allocation3] sm:$0xff]
    %1022 = vst.msk [vmem:[#allocation7] sm:$0xff] %vm80, %v1021
    %v1023 = vld [vmem:[#allocation4] sm:$0xff]
    %1024 = vst.msk [vmem:[#allocation9] sm:$0xff] %vm80, %v1023
    // Predicated region
    $region26: #{tpu_custom_call.1} parent=1 // pred_check
      _
    $region27: #{tpu_custom_call.1} parent=1 // pred_check_branch
      %1026 = sbr.rel (0) target = $region29
    $region28: #{tpu_custom_call.1} parent=1 // pred_region
      %s1028 = ssub.s32 1024, 1024
      %1029 = vsyncadd [#allocation6], %s1028
      %s1030 = sshll.u32 [#allocation5], 4
      %s1031 = int_to_ptr.vmem [resolvable:$true] %s1030
      %1036 = dma.vmem_to_hbm [thread:$0]  %s1031, 1024, %s6, [#allocation6], 128, 128, 8
    $region29: #{tpu_custom_call.1} parent=1 // pred_fallthru
      _
    // Predicated region
    $region30: #{tpu_custom_call.1} parent=1 // pred_check
      _
    $region31: #{tpu_custom_call.1} parent=1 // pred_check_branch
      %1038 = sbr.rel (0) target = $region33
    $region32: #{tpu_custom_call.1} parent=1 // pred_region
      %s1040 = ssub.s32 128, 128
      %1041 = vsyncadd [#allocation8], %s1040
      %s1043 = sshll.u32 [#allocation7], 4
      %s1044 = int_to_ptr.vmem [resolvable:$true] %s1043
      %1046 = dma.vmem_to_hbm [thread:$0]  %s1044, 128, %s7, [#allocation8]
    $region33: #{tpu_custom_call.1} parent=1 // pred_fallthru
      _
    // Predicated region
    $region34: #{tpu_custom_call.1} parent=1 // pred_check
      _
    $region35: #{tpu_custom_call.1} parent=1 // pred_check_branch
      %1048 = sbr.rel (0) target = $region37
    $region36: #{tpu_custom_call.1} parent=1 // pred_region
      %s1050 = ssub.s32 128, 128
      %1051 = vsyncadd [#allocation8], %s1050
      %s1053 = sshll.u32 [#allocation9], 4
      %s1054 = int_to_ptr.vmem [resolvable:$true] %s1053
      %1056 = dma.vmem_to_hbm [thread:$0]  %s1054, 128, %s8, [#allocation8]
    $region37: #{tpu_custom_call.1} parent=1 // pred_fallthru
      _
    // Predicated region
    $region38: #{tpu_custom_call.1} parent=1 // pred_check
      _
    $region39: #{tpu_custom_call.1} parent=1 // pred_check_branch
      %1058 = sbr.rel (0) target = $region41
    $region40: #{tpu_custom_call.1} parent=1 // pred_region
      %1059 = dma.done [#allocation6], 1024
    $region41: #{tpu_custom_call.1} parent=1 // pred_fallthru
      _
    // Predicated region
    $region42: #{tpu_custom_call.1} parent=1 // pred_check
      _
    $region43: #{tpu_custom_call.1} parent=1 // pred_check_branch
      %1061 = sbr.rel (0) target = $region45
    $region44: #{tpu_custom_call.1} parent=1 // pred_region
      %1062 = dma.done [#allocation8], 128
    $region45: #{tpu_custom_call.1} parent=1 // pred_fallthru
      _
    // Predicated region
    $region46: #{tpu_custom_call.1} parent=1 // pred_check
      _
    $region47: #{tpu_custom_call.1} parent=1 // pred_check_branch
      %1064 = sbr.rel (0) target = $region49
    $region48: #{tpu_custom_call.1} parent=1 // pred_region
      %1065 = dma.done [#allocation8], 128
    $region49: #{tpu_custom_call.1} parent=1 // pred_fallthru
      _
    %1066 = vsyncpa [#allocation6], 1
    %1067 = vsyncpa [#allocation8], 1

</llo_original>
